<compile_context>
chip_gen: v7x
topology: tpu7x:2x2x1
jax: 0.10.0
libtpu: 0.0.40
codegen_flags: <defaults>
</compile_context>

<pallas_src>
import functools
import math

import jax
import jax.numpy as jnp
from jax.experimental import pallas as pl
from jax.experimental.pallas import tpu as pltpu

FEATURE_MAPS = [
    [0, 1, 2], [1, 2, 3], [2, 3, 4], [3, 4, 5], [0, 4, 5], [0, 1, 5],
    [0, 1, 2, 3], [1, 2, 3, 4], [2, 3, 4, 5], [0, 3, 4, 5], [0, 1, 4, 5],
    [0, 1, 2, 5], [0, 1, 3, 4], [1, 2, 4, 5], [0, 2, 3, 5],
    [0, 1, 2, 3, 4, 5],
]
C_IN = 6
C_OUT = len(FEATURE_MAPS)   # 16
KH = KW = 5


# ---------------------------------------------------------------------------
# Kernel: one image per grid step, all 25 taps / 16 output maps fused.
# ---------------------------------------------------------------------------
def _c3_kernel(x_ref, w_ref, b_ref, o_ref, *, hw, width, kh, kw):
    """x_ref: [1, Cpad, HWP] flattened, zero-padded image
       w_ref: [KH*KW, C_OUT, Cpad] per-tap dense (mask-embedded) weights
       b_ref: [C_OUT, 1] bias
       o_ref: [1, C_OUT, HW] full-plane output (valid region cropped outside)."""
    x = x_ref[0]                                        # [Cpad, HWP]
    acc = jnp.zeros((o_ref.shape[1], hw), jnp.float32)
    for t in range(kh * kw):                            # 25 taps, statically unrolled
        off = (t // kw) * width + (t % kw)              # static lane offset of this tap
        xs = x[:, off:off + hw]                         # [Cpad, HW] shifted window
        acc = acc + jnp.dot(w_ref[t], xs,               # [16,Cpad]@[Cpad,HW] on MXU
                            preferred_element_type=jnp.float32)
    o_ref[0] = (acc + b_ref[...]).astype(o_ref.dtype)   # lane-dense store


# ---------------------------------------------------------------------------
# Wrapper
# ---------------------------------------------------------------------------
def c3_forward(x, w_dense, bias):
    """x: [N, 6, H, W], w_dense: [16, 6, 5, 5], bias: [16] -> [N, 16, H-4, W-4]."""
    n, c, h, w = x.shape
    assert c == C_IN
    oh, ow = h - KH + 1, w - KW + 1
    hw = h * w
    c_pad = 8                                           # sublane-friendly channel count
    # lane axis padded so the largest tap shift ((KH-1)*w + KW-1) stays in bounds
    hwp = ((hw + (KH - 1) * w + (KW - 1) + 127) // 128) * 128

    x_flat = jnp.zeros((n, c_pad, hwp), x.dtype)
    x_flat = x_flat.at[:, :c, :hw].set(x.reshape(n, c, hw))

    # w_tap[t, o, ci] = w_dense[o, ci, t // KW, t % KW]   (zeros for unused channels)
    w_tap = jnp.zeros((KH * KW, C_OUT, c_pad), jnp.float32)
    w_tap = w_tap.at[:, :, :c].set(
        jnp.transpose(w_dense, (2, 3, 0, 1)).reshape(KH * KW, C_OUT, C_IN))
    b2 = bias.reshape(C_OUT, 1).astype(jnp.float32)

    out_full = pl.pallas_call(
        functools.partial(_c3_kernel, hw=hw, width=w, kh=KH, kw=KW),
        out_shape=jax.ShapeDtypeStruct((n, C_OUT, hw), x.dtype),
        grid=(n,),
        in_specs=[
            pl.BlockSpec((1, c_pad, hwp), lambda i: (i, 0, 0)),          # image i
            pl.BlockSpec((KH * KW, C_OUT, c_pad), lambda i: (0, 0, 0)),  # weights
            pl.BlockSpec((C_OUT, 1), lambda i: (0, 0)),                  # bias
        ],
        out_specs=pl.BlockSpec((1, C_OUT, hw), lambda i: (i, 0, 0)),
        compiler_params=pltpu.CompilerParams(
            dimension_semantics=("parallel",)),
    )(x_flat, w_tap, b2)

    # Crop the full-plane result to the valid conv output.
    return out_full.reshape(n, C_OUT, h, w)[:, :, :oh, :ow]


# ---------------------------------------------------------------------------
# Parameter construction (mirrors the 16 nn.Conv2d layers, embedded densely)
# ---------------------------------------------------------------------------
def init_c3_params(key):
    w_dense = jnp.zeros((C_OUT, C_IN, KH, KW), jnp.float32)
    bias = jnp.zeros((C_OUT,), jnp.float32)
    keys = jax.random.split(key, 2 * C_OUT)
    for i, maps in enumerate(FEATURE_MAPS):
        fan_in = len(maps) * KH * KW
        bound = 1.0 / math.sqrt(fan_in)
        wi = jax.random.uniform(keys[2 * i], (len(maps), KH, KW),
                                minval=-bound, maxval=bound, dtype=jnp.float32)
        bi = jax.random.uniform(keys[2 * i + 1], (), minval=-bound, maxval=bound,
                                dtype=jnp.float32)
        w_dense = w_dense.at[i, jnp.array(maps)].set(wi)
        bias = bias.at[i].set(bi)
    return w_dense, bias


def c3_reference(x, w_dense, bias):
    out = jax.lax.conv_general_dilated(
        x, w_dense, window_strides=(1, 1), padding="VALID",
        dimension_numbers=("NCHW", "OIHW", "NCHW"),
        precision=jax.lax.Precision.HIGHEST)
    return out + bias[None, :, None, None]


if __name__ == "__main__":
    key = jax.random.PRNGKey(0)
    k_x, k_p = jax.random.split(key)
    # NCHW input; the module indexes channels 0..5, so C must be 6.
    x = jax.random.normal(k_x, (2, C_IN, 16, 16), dtype=jnp.float32)
    w_dense, bias = init_c3_params(k_p)

    out = jax.jit(c3_forward)(x, w_dense, bias)
    out = jax.block_until_ready(out)
    assert out.shape == (2, C_OUT, 12, 12), out.shape

    ref = c3_reference(x, w_dense, bias)
    assert float(jnp.max(jnp.abs(out - ref))) < 3e-2

    print("KERNEL_OK")
</pallas_src>

<mosaic_0001>
module attributes {stable_mosaic.version = 11 : i64} {
  func.func @_c3_kernel(%arg0: i32, %arg1: memref<1x8x384xf32, #tpu.memory_space<vmem>>, %arg2: memref<25x16x8xf32, #tpu.memory_space<vmem>>, %arg3: memref<16x1xf32, #tpu.memory_space<vmem>>, %arg4: memref<1x16x256xf32, #tpu.memory_space<vmem>>) attributes {dimension_semantics = [#tpu.dimension_semantics<parallel>], iteration_bounds = array<i64: 2>, scalar_prefetch = 0 : i64, scratch_operands = 0 : i64, tpu.core_type = #tpu.core_type<tc>, window_params = [{transform_indices = @transform_0, window_bounds = array<i64: 1, 8, 384>}, {pipeline_mode = #tpu.pipeline_mode<synchronous>, transform_indices = @transform_1, window_bounds = array<i64: 25, 16, 8>}, {pipeline_mode = #tpu.pipeline_mode<synchronous>, transform_indices = @transform_2, window_bounds = array<i64: 16, 1>}, {transform_indices = @transform_3, window_bounds = array<i64: 1, 16, 256>}]} {
    %c0 = arith.constant 0 : index
    %c0_0 = arith.constant 0 : index
    %c0_1 = arith.constant 0 : index
    %0 = vector.load %arg1[%c0, %c0_0, %c0_1] : memref<1x8x384xf32, #tpu.memory_space<vmem>>, vector<1x8x384xf32>
    %1 = vector.shape_cast %0 : vector<1x8x384xf32> to vector<8x384xf32>
    %cst = arith.constant 0.000000e+00 : f32
    %2 = vector.broadcast %cst : f32 to vector<16x256xf32>
    %3 = vector.extract_strided_slice %1 {offsets = [0, 0], sizes = [8, 256], strides = [1, 1]} : vector<8x384xf32> to vector<8x256xf32>
    %c0_2 = arith.constant 0 : index
    %c0_3 = arith.constant 0 : index
    %c0_4 = arith.constant 0 : index
    %4 = vector.load %arg2[%c0_2, %c0_3, %c0_4] : memref<25x16x8xf32, #tpu.memory_space<vmem>>, vector<1x16x8xf32>
    %5 = vector.shape_cast %4 : vector<1x16x8xf32> to vector<16x8xf32>
    %cst_5 = arith.constant dense<0.000000e+00> : vector<16x256xf32>
    %6 = tpu.matmul %5, %3, %cst_5 {dimension_numbers = #tpu.dot_dimension_numbers<[1], [0], [0], [1], [0, 0, 1, 1], [], []>} : vector<16x8xf32>, vector<8x256xf32>, vector<16x256xf32> -> vector<16x256xf32>
    %7 = arith.addf %2, %6 : vector<16x256xf32>
    %8 = vector.extract_strided_slice %1 {offsets = [0, 1], sizes = [8, 256], strides = [1, 1]} : vector<8x384xf32> to vector<8x256xf32>
    %c1 = arith.constant 1 : index
    %c0_6 = arith.constant 0 : index
    %c0_7 = arith.constant 0 : index
    %9 = vector.load %arg2[%c1, %c0_6, %c0_7] : memref<25x16x8xf32, #tpu.memory_space<vmem>>, vector<1x16x8xf32>
    %10 = vector.shape_cast %9 : vector<1x16x8xf32> to vector<16x8xf32>
    %cst_8 = arith.constant dense<0.000000e+00> : vector<16x256xf32>
    %11 = tpu.matmul %10, %8, %cst_8 {dimension_numbers = #tpu.dot_dimension_numbers<[1], [0], [0], [1], [0, 0, 1, 1], [], []>} : vector<16x8xf32>, vector<8x256xf32>, vector<16x256xf32> -> vector<16x256xf32>
    %12 = arith.addf %7, %11 : vector<16x256xf32>
    %13 = vector.extract_strided_slice %1 {offsets = [0, 2], sizes = [8, 256], strides = [1, 1]} : vector<8x384xf32> to vector<8x256xf32>
    %c2 = arith.constant 2 : index
    %c0_9 = arith.constant 0 : index
    %c0_10 = arith.constant 0 : index
    %14 = vector.load %arg2[%c2, %c0_9, %c0_10] : memref<25x16x8xf32, #tpu.memory_space<vmem>>, vector<1x16x8xf32>
    %15 = vector.shape_cast %14 : vector<1x16x8xf32> to vector<16x8xf32>
    %cst_11 = arith.constant dense<0.000000e+00> : vector<16x256xf32>
    %16 = tpu.matmul %15, %13, %cst_11 {dimension_numbers = #tpu.dot_dimension_numbers<[1], [0], [0], [1], [0, 0, 1, 1], [], []>} : vector<16x8xf32>, vector<8x256xf32>, vector<16x256xf32> -> vector<16x256xf32>
    %17 = arith.addf %12, %16 : vector<16x256xf32>
    %18 = vector.extract_strided_slice %1 {offsets = [0, 3], sizes = [8, 256], strides = [1, 1]} : vector<8x384xf32> to vector<8x256xf32>
    %c3 = arith.constant 3 : index
    %c0_12 = arith.constant 0 : index
    %c0_13 = arith.constant 0 : index
    %19 = vector.load %arg2[%c3, %c0_12, %c0_13] : memref<25x16x8xf32, #tpu.memory_space<vmem>>, vector<1x16x8xf32>
    %20 = vector.shape_cast %19 : vector<1x16x8xf32> to vector<16x8xf32>
    %cst_14 = arith.constant dense<0.000000e+00> : vector<16x256xf32>
    %21 = tpu.matmul %20, %18, %cst_14 {dimension_numbers = #tpu.dot_dimension_numbers<[1], [0], [0], [1], [0, 0, 1, 1], [], []>} : vector<16x8xf32>, vector<8x256xf32>, vector<16x256xf32> -> vector<16x256xf32>
    %22 = arith.addf %17, %21 : vector<16x256xf32>
    %23 = vector.extract_strided_slice %1 {offsets = [0, 4], sizes = [8, 256], strides = [1, 1]} : vector<8x384xf32> to vector<8x256xf32>
    %c4 = arith.constant 4 : index
    %c0_15 = arith.constant 0 : index
    %c0_16 = arith.constant 0 : index
    %24 = vector.load %arg2[%c4, %c0_15, %c0_16] : memref<25x16x8xf32, #tpu.memory_space<vmem>>, vector<1x16x8xf32>
    %25 = vector.shape_cast %24 : vector<1x16x8xf32> to vector<16x8xf32>
    %cst_17 = arith.constant dense<0.000000e+00> : vector<16x256xf32>
    %26 = tpu.matmul %25, %23, %cst_17 {dimension_numbers = #tpu.dot_dimension_numbers<[1], [0], [0], [1], [0, 0, 1, 1], [], []>} : vector<16x8xf32>, vector<8x256xf32>, vector<16x256xf32> -> vector<16x256xf32>
    %27 = arith.addf %22, %26 : vector<16x256xf32>
    %28 = vector.extract_strided_slice %1 {offsets = [0, 16], sizes = [8, 256], strides = [1, 1]} : vector<8x384xf32> to vector<8x256xf32>
    %c5 = arith.constant 5 : index
    %c0_18 = arith.constant 0 : index
    %c0_19 = arith.constant 0 : index
    %29 = vector.load %arg2[%c5, %c0_18, %c0_19] : memref<25x16x8xf32, #tpu.memory_space<vmem>>, vector<1x16x8xf32>
    %30 = vector.shape_cast %29 : vector<1x16x8xf32> to vector<16x8xf32>
    %cst_20 = arith.constant dense<0.000000e+00> : vector<16x256xf32>
    %31 = tpu.matmul %30, %28, %cst_20 {dimension_numbers = #tpu.dot_dimension_numbers<[1], [0], [0], [1], [0, 0, 1, 1], [], []>} : vector<16x8xf32>, vector<8x256xf32>, vector<16x256xf32> -> vector<16x256xf32>
    %32 = arith.addf %27, %31 : vector<16x256xf32>
    %33 = vector.extract_strided_slice %1 {offsets = [0, 17], sizes = [8, 256], strides = [1, 1]} : vector<8x384xf32> to vector<8x256xf32>
    %c6 = arith.constant 6 : index
    %c0_21 = arith.constant 0 : index
    %c0_22 = arith.constant 0 : index
    %34 = vector.load %arg2[%c6, %c0_21, %c0_22] : memref<25x16x8xf32, #tpu.memory_space<vmem>>, vector<1x16x8xf32>
    %35 = vector.shape_cast %34 : vector<1x16x8xf32> to vector<16x8xf32>
    %cst_23 = arith.constant dense<0.000000e+00> : vector<16x256xf32>
    %36 = tpu.matmul %35, %33, %cst_23 {dimension_numbers = #tpu.dot_dimension_numbers<[1], [0], [0], [1], [0, 0, 1, 1], [], []>} : vector<16x8xf32>, vector<8x256xf32>, vector<16x256xf32> -> vector<16x256xf32>
    %37 = arith.addf %32, %36 : vector<16x256xf32>
    %38 = vector.extract_strided_slice %1 {offsets = [0, 18], sizes = [8, 256], strides = [1, 1]} : vector<8x384xf32> to vector<8x256xf32>
    %c7 = arith.constant 7 : index
    %c0_24 = arith.constant 0 : index
    %c0_25 = arith.constant 0 : index
    %39 = vector.load %arg2[%c7, %c0_24, %c0_25] : memref<25x16x8xf32, #tpu.memory_space<vmem>>, vector<1x16x8xf32>
    %40 = vector.shape_cast %39 : vector<1x16x8xf32> to vector<16x8xf32>
    %cst_26 = arith.constant dense<0.000000e+00> : vector<16x256xf32>
    %41 = tpu.matmul %40, %38, %cst_26 {dimension_numbers = #tpu.dot_dimension_numbers<[1], [0], [0], [1], [0, 0, 1, 1], [], []>} : vector<16x8xf32>, vector<8x256xf32>, vector<16x256xf32> -> vector<16x256xf32>
    %42 = arith.addf %37, %41 : vector<16x256xf32>
    %43 = vector.extract_strided_slice %1 {offsets = [0, 19], sizes = [8, 256], strides = [1, 1]} : vector<8x384xf32> to vector<8x256xf32>
    %c8 = arith.constant 8 : index
    %c0_27 = arith.constant 0 : index
    %c0_28 = arith.constant 0 : index
    %44 = vector.load %arg2[%c8, %c0_27, %c0_28] : memref<25x16x8xf32, #tpu.memory_space<vmem>>, vector<1x16x8xf32>
    %45 = vector.shape_cast %44 : vector<1x16x8xf32> to vector<16x8xf32>
    %cst_29 = arith.constant dense<0.000000e+00> : vector<16x256xf32>
    %46 = tpu.matmul %45, %43, %cst_29 {dimension_numbers = #tpu.dot_dimension_numbers<[1], [0], [0], [1], [0, 0, 1, 1], [], []>} : vector<16x8xf32>, vector<8x256xf32>, vector<16x256xf32> -> vector<16x256xf32>
    %47 = arith.addf %42, %46 : vector<16x256xf32>
    %48 = vector.extract_strided_slice %1 {offsets = [0, 20], sizes = [8, 256], strides = [1, 1]} : vector<8x384xf32> to vector<8x256xf32>
    %c9 = arith.constant 9 : index
    %c0_30 = arith.constant 0 : index
    %c0_31 = arith.constant 0 : index
    %49 = vector.load %arg2[%c9, %c0_30, %c0_31] : memref<25x16x8xf32, #tpu.memory_space<vmem>>, vector<1x16x8xf32>
    %50 = vector.shape_cast %49 : vector<1x16x8xf32> to vector<16x8xf32>
    %cst_32 = arith.constant dense<0.000000e+00> : vector<16x256xf32>
    %51 = tpu.matmul %50, %48, %cst_32 {dimension_numbers = #tpu.dot_dimension_numbers<[1], [0], [0], [1], [0, 0, 1, 1], [], []>} : vector<16x8xf32>, vector<8x256xf32>, vector<16x256xf32> -> vector<16x256xf32>
    %52 = arith.addf %47, %51 : vector<16x256xf32>
    %53 = vector.extract_strided_slice %1 {offsets = [0, 32], sizes = [8, 256], strides = [1, 1]} : vector<8x384xf32> to vector<8x256xf32>
    %c10 = arith.constant 10 : index
    %c0_33 = arith.constant 0 : index
    %c0_34 = arith.constant 0 : index
    %54 = vector.load %arg2[%c10, %c0_33, %c0_34] : memref<25x16x8xf32, #tpu.memory_space<vmem>>, vector<1x16x8xf32>
    %55 = vector.shape_cast %54 : vector<1x16x8xf32> to vector<16x8xf32>
    %cst_35 = arith.constant dense<0.000000e+00> : vector<16x256xf32>
    %56 = tpu.matmul %55, %53, %cst_35 {dimension_numbers = #tpu.dot_dimension_numbers<[1], [0], [0], [1], [0, 0, 1, 1], [], []>} : vector<16x8xf32>, vector<8x256xf32>, vector<16x256xf32> -> vector<16x256xf32>
    %57 = arith.addf %52, %56 : vector<16x256xf32>
    %58 = vector.extract_strided_slice %1 {offsets = [0, 33], sizes = [8, 256], strides = [1, 1]} : vector<8x384xf32> to vector<8x256xf32>
    %c11 = arith.constant 11 : index
    %c0_36 = arith.constant 0 : index
    %c0_37 = arith.constant 0 : index
    %59 = vector.load %arg2[%c11, %c0_36, %c0_37] : memref<25x16x8xf32, #tpu.memory_space<vmem>>, vector<1x16x8xf32>
    %60 = vector.shape_cast %59 : vector<1x16x8xf32> to vector<16x8xf32>
    %cst_38 = arith.constant dense<0.000000e+00> : vector<16x256xf32>
    %61 = tpu.matmul %60, %58, %cst_38 {dimension_numbers = #tpu.dot_dimension_numbers<[1], [0], [0], [1], [0, 0, 1, 1], [], []>} : vector<16x8xf32>, vector<8x256xf32>, vector<16x256xf32> -> vector<16x256xf32>
    %62 = arith.addf %57, %61 : vector<16x256xf32>
    %63 = vector.extract_strided_slice %1 {offsets = [0, 34], sizes = [8, 256], strides = [1, 1]} : vector<8x384xf32> to vector<8x256xf32>
    %c12 = arith.constant 12 : index
    %c0_39 = arith.constant 0 : index
    %c0_40 = arith.constant 0 : index
    %64 = vector.load %arg2[%c12, %c0_39, %c0_40] : memref<25x16x8xf32, #tpu.memory_space<vmem>>, vector<1x16x8xf32>
    %65 = vector.shape_cast %64 : vector<1x16x8xf32> to vector<16x8xf32>
    %cst_41 = arith.constant dense<0.000000e+00> : vector<16x256xf32>
    %66 = tpu.matmul %65, %63, %cst_41 {dimension_numbers = #tpu.dot_dimension_numbers<[1], [0], [0], [1], [0, 0, 1, 1], [], []>} : vector<16x8xf32>, vector<8x256xf32>, vector<16x256xf32> -> vector<16x256xf32>
    %67 = arith.addf %62, %66 : vector<16x256xf32>
    %68 = vector.extract_strided_slice %1 {offsets = [0, 35], sizes = [8, 256], strides = [1, 1]} : vector<8x384xf32> to vector<8x256xf32>
    %c13 = arith.constant 13 : index
    %c0_42 = arith.constant 0 : index
    %c0_43 = arith.constant 0 : index
    %69 = vector.load %arg2[%c13, %c0_42, %c0_43] : memref<25x16x8xf32, #tpu.memory_space<vmem>>, vector<1x16x8xf32>
    %70 = vector.shape_cast %69 : vector<1x16x8xf32> to vector<16x8xf32>
    %cst_44 = arith.constant dense<0.000000e+00> : vector<16x256xf32>
    %71 = tpu.matmul %70, %68, %cst_44 {dimension_numbers = #tpu.dot_dimension_numbers<[1], [0], [0], [1], [0, 0, 1, 1], [], []>} : vector<16x8xf32>, vector<8x256xf32>, vector<16x256xf32> -> vector<16x256xf32>
    %72 = arith.addf %67, %71 : vector<16x256xf32>
    %73 = vector.extract_strided_slice %1 {offsets = [0, 36], sizes = [8, 256], strides = [1, 1]} : vector<8x384xf32> to vector<8x256xf32>
    %c14 = arith.constant 14 : index
    %c0_45 = arith.constant 0 : index
    %c0_46 = arith.constant 0 : index
    %74 = vector.load %arg2[%c14, %c0_45, %c0_46] : memref<25x16x8xf32, #tpu.memory_space<vmem>>, vector<1x16x8xf32>
    %75 = vector.shape_cast %74 : vector<1x16x8xf32> to vector<16x8xf32>
    %cst_47 = arith.constant dense<0.000000e+00> : vector<16x256xf32>
    %76 = tpu.matmul %75, %73, %cst_47 {dimension_numbers = #tpu.dot_dimension_numbers<[1], [0], [0], [1], [0, 0, 1, 1], [], []>} : vector<16x8xf32>, vector<8x256xf32>, vector<16x256xf32> -> vector<16x256xf32>
    %77 = arith.addf %72, %76 : vector<16x256xf32>
    %78 = vector.extract_strided_slice %1 {offsets = [0, 48], sizes = [8, 256], strides = [1, 1]} : vector<8x384xf32> to vector<8x256xf32>
    %c15 = arith.constant 15 : index
    %c0_48 = arith.constant 0 : index
    %c0_49 = arith.constant 0 : index
    %79 = vector.load %arg2[%c15, %c0_48, %c0_49] : memref<25x16x8xf32, #tpu.memory_space<vmem>>, vector<1x16x8xf32>
    %80 = vector.shape_cast %79 : vector<1x16x8xf32> to vector<16x8xf32>
    %cst_50 = arith.constant dense<0.000000e+00> : vector<16x256xf32>
    %81 = tpu.matmul %80, %78, %cst_50 {dimension_numbers = #tpu.dot_dimension_numbers<[1], [0], [0], [1], [0, 0, 1, 1], [], []>} : vector<16x8xf32>, vector<8x256xf32>, vector<16x256xf32> -> vector<16x256xf32>
    %82 = arith.addf %77, %81 : vector<16x256xf32>
    %83 = vector.extract_strided_slice %1 {offsets = [0, 49], sizes = [8, 256], strides = [1, 1]} : vector<8x384xf32> to vector<8x256xf32>
    %c16 = arith.constant 16 : index
    %c0_51 = arith.constant 0 : index
    %c0_52 = arith.constant 0 : index
    %84 = vector.load %arg2[%c16, %c0_51, %c0_52] : memref<25x16x8xf32, #tpu.memory_space<vmem>>, vector<1x16x8xf32>
    %85 = vector.shape_cast %84 : vector<1x16x8xf32> to vector<16x8xf32>
    %cst_53 = arith.constant dense<0.000000e+00> : vector<16x256xf32>
    %86 = tpu.matmul %85, %83, %cst_53 {dimension_numbers = #tpu.dot_dimension_numbers<[1], [0], [0], [1], [0, 0, 1, 1], [], []>} : vector<16x8xf32>, vector<8x256xf32>, vector<16x256xf32> -> vector<16x256xf32>
    %87 = arith.addf %82, %86 : vector<16x256xf32>
    %88 = vector.extract_strided_slice %1 {offsets = [0, 50], sizes = [8, 256], strides = [1, 1]} : vector<8x384xf32> to vector<8x256xf32>
    %c17 = arith.constant 17 : index
    %c0_54 = arith.constant 0 : index
    %c0_55 = arith.constant 0 : index
    %89 = vector.load %arg2[%c17, %c0_54, %c0_55] : memref<25x16x8xf32, #tpu.memory_space<vmem>>, vector<1x16x8xf32>
    %90 = vector.shape_cast %89 : vector<1x16x8xf32> to vector<16x8xf32>
    %cst_56 = arith.constant dense<0.000000e+00> : vector<16x256xf32>
    %91 = tpu.matmul %90, %88, %cst_56 {dimension_numbers = #tpu.dot_dimension_numbers<[1], [0], [0], [1], [0, 0, 1, 1], [], []>} : vector<16x8xf32>, vector<8x256xf32>, vector<16x256xf32> -> vector<16x256xf32>
    %92 = arith.addf %87, %91 : vector<16x256xf32>
    %93 = vector.extract_strided_slice %1 {offsets = [0, 51], sizes = [8, 256], strides = [1, 1]} : vector<8x384xf32> to vector<8x256xf32>
    %c18 = arith.constant 18 : index
    %c0_57 = arith.constant 0 : index
    %c0_58 = arith.constant 0 : index
    %94 = vector.load %arg2[%c18, %c0_57, %c0_58] : memref<25x16x8xf32, #tpu.memory_space<vmem>>, vector<1x16x8xf32>
    %95 = vector.shape_cast %94 : vector<1x16x8xf32> to vector<16x8xf32>
    %cst_59 = arith.constant dense<0.000000e+00> : vector<16x256xf32>
    %96 = tpu.matmul %95, %93, %cst_59 {dimension_numbers = #tpu.dot_dimension_numbers<[1], [0], [0], [1], [0, 0, 1, 1], [], []>} : vector<16x8xf32>, vector<8x256xf32>, vector<16x256xf32> -> vector<16x256xf32>
    %97 = arith.addf %92, %96 : vector<16x256xf32>
    %98 = vector.extract_strided_slice %1 {offsets = [0, 52], sizes = [8, 256], strides = [1, 1]} : vector<8x384xf32> to vector<8x256xf32>
    %c19 = arith.constant 19 : index
    %c0_60 = arith.constant 0 : index
    %c0_61 = arith.constant 0 : index
    %99 = vector.load %arg2[%c19, %c0_60, %c0_61] : memref<25x16x8xf32, #tpu.memory_space<vmem>>, vector<1x16x8xf32>
    %100 = vector.shape_cast %99 : vector<1x16x8xf32> to vector<16x8xf32>
    %cst_62 = arith.constant dense<0.000000e+00> : vector<16x256xf32>
    %101 = tpu.matmul %100, %98, %cst_62 {dimension_numbers = #tpu.dot_dimension_numbers<[1], [0], [0], [1], [0, 0, 1, 1], [], []>} : vector<16x8xf32>, vector<8x256xf32>, vector<16x256xf32> -> vector<16x256xf32>
    %102 = arith.addf %97, %101 : vector<16x256xf32>
    %103 = vector.extract_strided_slice %1 {offsets = [0, 64], sizes = [8, 256], strides = [1, 1]} : vector<8x384xf32> to vector<8x256xf32>
    %c20 = arith.constant 20 : index
    %c0_63 = arith.constant 0 : index
    %c0_64 = arith.constant 0 : index
    %104 = vector.load %arg2[%c20, %c0_63, %c0_64] : memref<25x16x8xf32, #tpu.memory_space<vmem>>, vector<1x16x8xf32>
    %105 = vector.shape_cast %104 : vector<1x16x8xf32> to vector<16x8xf32>
    %cst_65 = arith.constant dense<0.000000e+00> : vector<16x256xf32>
    %106 = tpu.matmul %105, %103, %cst_65 {dimension_numbers = #tpu.dot_dimension_numbers<[1], [0], [0], [1], [0, 0, 1, 1], [], []>} : vector<16x8xf32>, vector<8x256xf32>, vector<16x256xf32> -> vector<16x256xf32>
    %107 = arith.addf %102, %106 : vector<16x256xf32>
    %108 = vector.extract_strided_slice %1 {offsets = [0, 65], sizes = [8, 256], strides = [1, 1]} : vector<8x384xf32> to vector<8x256xf32>
    %c21 = arith.constant 21 : index
    %c0_66 = arith.constant 0 : index
    %c0_67 = arith.constant 0 : index
    %109 = vector.load %arg2[%c21, %c0_66, %c0_67] : memref<25x16x8xf32, #tpu.memory_space<vmem>>, vector<1x16x8xf32>
    %110 = vector.shape_cast %109 : vector<1x16x8xf32> to vector<16x8xf32>
    %cst_68 = arith.constant dense<0.000000e+00> : vector<16x256xf32>
    %111 = tpu.matmul %110, %108, %cst_68 {dimension_numbers = #tpu.dot_dimension_numbers<[1], [0], [0], [1], [0, 0, 1, 1], [], []>} : vector<16x8xf32>, vector<8x256xf32>, vector<16x256xf32> -> vector<16x256xf32>
    %112 = arith.addf %107, %111 : vector<16x256xf32>
    %113 = vector.extract_strided_slice %1 {offsets = [0, 66], sizes = [8, 256], strides = [1, 1]} : vector<8x384xf32> to vector<8x256xf32>
    %c22 = arith.constant 22 : index
    %c0_69 = arith.constant 0 : index
    %c0_70 = arith.constant 0 : index
    %114 = vector.load %arg2[%c22, %c0_69, %c0_70] : memref<25x16x8xf32, #tpu.memory_space<vmem>>, vector<1x16x8xf32>
    %115 = vector.shape_cast %114 : vector<1x16x8xf32> to vector<16x8xf32>
    %cst_71 = arith.constant dense<0.000000e+00> : vector<16x256xf32>
    %116 = tpu.matmul %115, %113, %cst_71 {dimension_numbers = #tpu.dot_dimension_numbers<[1], [0], [0], [1], [0, 0, 1, 1], [], []>} : vector<16x8xf32>, vector<8x256xf32>, vector<16x256xf32> -> vector<16x256xf32>
    %117 = arith.addf %112, %116 : vector<16x256xf32>
    %118 = vector.extract_strided_slice %1 {offsets = [0, 67], sizes = [8, 256], strides = [1, 1]} : vector<8x384xf32> to vector<8x256xf32>
    %c23 = arith.constant 23 : index
    %c0_72 = arith.constant 0 : index
    %c0_73 = arith.constant 0 : index
    %119 = vector.load %arg2[%c23, %c0_72, %c0_73] : memref<25x16x8xf32, #tpu.memory_space<vmem>>, vector<1x16x8xf32>
    %120 = vector.shape_cast %119 : vector<1x16x8xf32> to vector<16x8xf32>
    %cst_74 = arith.constant dense<0.000000e+00> : vector<16x256xf32>
    %121 = tpu.matmul %120, %118, %cst_74 {dimension_numbers = #tpu.dot_dimension_numbers<[1], [0], [0], [1], [0, 0, 1, 1], [], []>} : vector<16x8xf32>, vector<8x256xf32>, vector<16x256xf32> -> vector<16x256xf32>
    %122 = arith.addf %117, %121 : vector<16x256xf32>
    %123 = vector.extract_strided_slice %1 {offsets = [0, 68], sizes = [8, 256], strides = [1, 1]} : vector<8x384xf32> to vector<8x256xf32>
    %c24 = arith.constant 24 : index
    %c0_75 = arith.constant 0 : index
    %c0_76 = arith.constant 0 : index
    %124 = vector.load %arg2[%c24, %c0_75, %c0_76] : memref<25x16x8xf32, #tpu.memory_space<vmem>>, vector<1x16x8xf32>
    %125 = vector.shape_cast %124 : vector<1x16x8xf32> to vector<16x8xf32>
    %cst_77 = arith.constant dense<0.000000e+00> : vector<16x256xf32>
    %126 = tpu.matmul %125, %123, %cst_77 {dimension_numbers = #tpu.dot_dimension_numbers<[1], [0], [0], [1], [0, 0, 1, 1], [], []>} : vector<16x8xf32>, vector<8x256xf32>, vector<16x256xf32> -> vector<16x256xf32>
    %127 = arith.addf %122, %126 : vector<16x256xf32>
    %c0_78 = arith.constant 0 : index
    %c0_79 = arith.constant 0 : index
    %128 = vector.load %arg3[%c0_78, %c0_79] : memref<16x1xf32, #tpu.memory_space<vmem>>, vector<16x1xf32>
    %129 = vector.broadcast %128 : vector<16x1xf32> to vector<16x256xf32>
    %130 = arith.addf %127, %129 : vector<16x256xf32>
    %c0_80 = arith.constant 0 : index
    %c0_81 = arith.constant 0 : index
    %c0_82 = arith.constant 0 : index
    %131 = vector.load %arg4[%c0_80, %c0_81, %c0_82] : memref<1x16x256xf32, #tpu.memory_space<vmem>>, vector<1x16x256xf32>
    %132 = vector.shape_cast %131 : vector<1x16x256xf32> to vector<16x256xf32>
    %133 = vector.shape_cast %130 : vector<16x256xf32> to vector<1x16x256xf32>
    tpu.vector_store %arg4[%c0_80, %c0_81, %c0_82], %133 {strides = array<i32>} : memref<1x16x256xf32, #tpu.memory_space<vmem>>, vector<1x16x256xf32>,
    return
  }
  func.func @transform_0(%arg0: i32) -> (i32, i32, i32) {
    %c0_i32 = arith.constant 0 : i32
    %c0_i32_0 = arith.constant 0 : i32
    %c0_i32_1 = arith.constant 0 : i32
    return %arg0, %c0_i32, %c0_i32_0 : i32, i32, i32
  }
  func.func @transform_1(%arg0: i32) -> (i32, i32, i32) {
    %c0_i32 = arith.constant 0 : i32
    %c0_i32_0 = arith.constant 0 : i32
    %c0_i32_1 = arith.constant 0 : i32
    %c0_i32_2 = arith.constant 0 : i32
    return %c0_i32, %c0_i32_0, %c0_i32_1 : i32, i32, i32
  }
  func.func @transform_2(%arg0: i32) -> (i32, i32) {
    %c0_i32 = arith.constant 0 : i32
    %c0_i32_0 = arith.constant 0 : i32
    %c0_i32_1 = arith.constant 0 : i32
    return %c0_i32, %c0_i32_0 : i32, i32
  }
  func.func @transform_3(%arg0: i32) -> (i32, i32, i32) {
    %c0_i32 = arith.constant 0 : i32
    %c0_i32_0 = arith.constant 0 : i32
    %c0_i32_1 = arith.constant 0 : i32
    return %arg0, %c0_i32, %c0_i32_0 : i32, i32, i32
  }
}

</mosaic_0001>

<llo_original>
// kernel: c3_forward.1
$region0: #{c3_forward.1}
  #allocation0 [shape = 'u32[]', space=smem, size = 0x4, offset = 0x4, fixed_abs, tag = 'smem constant byte address 0x4 - core index']
  #allocation1 [shape = 'u32[144,128]{1,0:T(1,128)}', space=vmem, size = 0x12000, scoped, tag = 'internal scratch']
  %s0 = inlined_call_operand.vmem [shape: f32[2,8,384], index: 0, kind: input, shape index: {}]
  %s1 = inlined_call_operand.vmem [shape: f32[25,16,8], index: 1, kind: input, shape index: {}]
  %s2 = inlined_call_operand.vmem [shape: f32[16,1], index: 2, kind: input, shape index: {}]
  %s3 = inlined_call_operand.vmem [shape: f32[2,16,256], index: 3, kind: output, shape index: {}]
  %s4 = sld [smem:[#allocation0]]
  $region45: #{c3_forward.1} parent=0
    _
  %s6 = ssub.s32 1, %s4
  %s7 = scalar_select 0, %s6, %s4
  loop: start=0, step=1, limit=4
  $region2: #{c3_forward.1} parent=0 // loop_pre_header
    _
  $region3: #{c3_forward.1} parent=0 // loop_header
    %s9 = sphi 0, %s13
    %p10 = scmp.ge.s32.totalorder %s9, 4
    %s19 = sphi 0, %s21
    %s22 = sphi 0, %s19
    %s23 = sphi 0, %s22
    %s39 = sphi 0, %s23
    %s43 = sphi 0, %s43
    %s45 = sphi 0, %s43
    %s46 = sphi 0, %s45
    %s60 = sphi 0, %s46
    %s64 = sphi 0, %s64
    %s66 = sphi 0, %s64
    %s67 = sphi 0, %s66
    %s81 = sphi 0, %s67
    %s87 = sphi 0, %s89
    %s90 = sphi 0, %s87
    %s91 = sphi 0, %s90
    %s107 = sphi 0, %s91
  $region4: #{c3_forward.1} parent=0 // loop_header_branch
    %12 = sbr.rel (%p10) target = $region8
  $region5: #{c3_forward.1} parent=0 // loop_body
    %s14 = ssub.s32 %s9, 1
    %s15 = ssub.s32 %s9, 2
    %s16 = sadd.s32 %s9, 1
    %s17 = ssub.s32 %s9, %s16
    %p18 = scmp.eq.s32.totalorder %s17, 0
    %s20 = sadd.s32 %s19, 1
    %s21 = scalar_select %p18, %s19, %s20
    %p24 = pneg %p18
    %p25 = scmp.eq.s32.totalorder %s9, 1
    %p26 = por %p24, %p25
    %p27 = scmp.ne.s32.totalorder %s19, %s22
    %p28 = scmp.eq.s32.totalorder %s9, 0
    %p29 = por %p27, %p28
    %p30 = scmp.ne.s32.totalorder %s19, %s22
    %p31 = scmp.eq.s32.totalorder %s14, 1
    %p32 = por %p30, %p31
    %p33 = scmp.ne.s32.totalorder %s22, %s23
    %p34 = scmp.eq.s32.totalorder %s14, 0
    %p35 = por %p33, %p34
    %p36 = scmp.ne.s32.totalorder %s22, %s23
    %p37 = scmp.eq.s32.totalorder %s15, 1
    %p38 = por %p36, %p37
    %p40 = scmp.ne.s32.totalorder %s23, %s39
    %p41 = scmp.eq.s32.totalorder %s15, 0
    %p42 = por %p40, %p41
    %s44 = sadd.s32 %s43, 1
    %p47 = scmp.eq.s32.totalorder %s9, 1
    %p48 = scmp.ne.s32.totalorder %s43, %s45
    %p49 = scmp.eq.s32.totalorder %s9, 0
    %p50 = por %p48, %p49
    %p51 = scmp.ne.s32.totalorder %s43, %s45
    %p52 = scmp.eq.s32.totalorder %s14, 1
    %p53 = por %p51, %p52
    %p54 = scmp.ne.s32.totalorder %s45, %s46
    %p55 = scmp.eq.s32.totalorder %s14, 0
    %p56 = por %p54, %p55
    %p57 = scmp.ne.s32.totalorder %s45, %s46
    %p58 = scmp.eq.s32.totalorder %s15, 1
    %p59 = por %p57, %p58
    %p61 = scmp.ne.s32.totalorder %s46, %s60
    %p62 = scmp.eq.s32.totalorder %s15, 0
    %p63 = por %p61, %p62
    %s65 = sadd.s32 %s64, 1
    %p68 = scmp.eq.s32.totalorder %s9, 1
    %p69 = scmp.ne.s32.totalorder %s64, %s66
    %p70 = scmp.eq.s32.totalorder %s9, 0
    %p71 = por %p69, %p70
    %p72 = scmp.ne.s32.totalorder %s64, %s66
    %p73 = scmp.eq.s32.totalorder %s14, 1
    %p74 = por %p72, %p73
    %p75 = scmp.ne.s32.totalorder %s66, %s67
    %p76 = scmp.eq.s32.totalorder %s14, 0
    %p77 = por %p75, %p76
    %p78 = scmp.ne.s32.totalorder %s66, %s67
    %p79 = scmp.eq.s32.totalorder %s15, 1
    %p80 = por %p78, %p79
    %p82 = scmp.ne.s32.totalorder %s67, %s81
    %p83 = scmp.eq.s32.totalorder %s15, 0
    %p84 = por %p82, %p83
    %s85 = ssub.s32 %s9, %s16
    %p86 = scmp.eq.s32.totalorder %s85, 0
    %s88 = sadd.s32 %s87, 1
    %s89 = scalar_select %p86, %s87, %s88
    %p92 = pneg %p86
    %p93 = scmp.eq.s32.totalorder %s9, 1
    %p94 = por %p92, %p93
    %p95 = scmp.ne.s32.totalorder %s87, %s90
    %p96 = scmp.eq.s32.totalorder %s9, 0
    %p97 = por %p95, %p96
    %p98 = scmp.ne.s32.totalorder %s87, %s90
    %p99 = scmp.eq.s32.totalorder %s14, 1
    %p100 = por %p98, %p99
    %p101 = scmp.ne.s32.totalorder %s90, %s91
    %p102 = scmp.eq.s32.totalorder %s14, 0
    %p103 = por %p101, %p102
    %p104 = scmp.ne.s32.totalorder %s90, %s91
    %p105 = scmp.eq.s32.totalorder %s15, 1
    %p106 = por %p104, %p105
    %p108 = scmp.ne.s32.totalorder %s91, %s107
    %p109 = scmp.eq.s32.totalorder %s15, 0
    %p110 = por %p108, %p109
    %p111 = scmp.le.s32.totalorder 1, %s9
    %p112 = scmp.lt.s32.totalorder %s9, 3
    %p113 = pnand %p111, %p112
    %p114 = pneg %p113
    // Predicated region
    $region9: #{c3_forward.1} parent=5 // pred_check
      _
    $region10: #{c3_forward.1} parent=5 // pred_check_branch
      %116 = sbr.rel (%p113) target = $region12
    $region11: #{c3_forward.1} parent=5 // pred_region
      %s117 = ssub.s32 %s9, 1
      // Predicated region
      $region13: #{c3_forward.1} parent=11 // pred_check
        %p118 = pneg %p56
      $region14: #{c3_forward.1} parent=11 // pred_check_branch
        %120 = sbr.rel (%p118) target = $region16
      $region15: #{c3_forward.1} parent=11 // pred_region
        _
      $region16: #{c3_forward.1} parent=11 // pred_fallthru
        _
      // Predicated region
      $region17: #{c3_forward.1} parent=11 // pred_check
        %p121 = pneg %p77
      $region18: #{c3_forward.1} parent=11 // pred_check_branch
        %123 = sbr.rel (%p121) target = $region20
      $region19: #{c3_forward.1} parent=11 // pred_region
        _
      $region20: #{c3_forward.1} parent=11 // pred_fallthru
        _
    $region12: #{c3_forward.1} parent=5 // pred_fallthru
      _
    %p124 = scmp.lt.s32.totalorder %s9, 2
    // Predicated region
    $region21: #{c3_forward.1} parent=5 // pred_check
      %p125 = pneg %p124
    $region22: #{c3_forward.1} parent=5 // pred_check_branch
      %127 = sbr.rel (%p125) target = $region24
    $region23: #{c3_forward.1} parent=5 // pred_region
      // Predicated region
      $region25: #{c3_forward.1} parent=23 // pred_check
        %p128 = pneg %p29
      $region26: #{c3_forward.1} parent=23 // pred_check_branch
        %130 = sbr.rel (%p128) target = $region28
      $region27: #{c3_forward.1} parent=23 // pred_region
        %p131 = scmp.lt.s32.totalorder %s9, 1
        %s132 = scalar_select %p131, %s9, 1
        %s133 = smul.addr %s132, 3
        %s134 = smul.addr %s133, 8
        %s135 = scalar_lea.vmem %s0, %s134
      $region28: #{c3_forward.1} parent=23 // pred_fallthru
        _
    $region24: #{c3_forward.1} parent=5 // pred_fallthru
      _
    %p136 = scmp.le.s32.totalorder 1, %s9
    %p137 = scmp.lt.s32.totalorder %s9, 3
    %p138 = pnand %p136, %p137
    %p139 = pneg %p138
    // Predicated region
    $region29: #{c3_forward.1} parent=5 // pred_check
      _
    $region30: #{c3_forward.1} parent=5 // pred_check_branch
      %141 = sbr.rel (%p138) target = $region32
    $region31: #{c3_forward.1} parent=5 // pred_region
      %s142 = ssub.s32 %s9, 1
      %p143 = scmp.lt.s32.totalorder %s14, 1
      %s144 = scalar_select %p143, %s14, 1
      %s145 = smul.addr %s144, 3
      %s146 = smul.addr %s145, 8
      %s147 = scalar_lea.vmem %s0, %s146
      %p148 = pneg %p35
      %p149 = pneg %p32
      %p150 = pneg %p56
      %p151 = pneg %p53
      %p152 = pneg %p77
      %p153 = pneg %p74
      %p154 = pneg %p103
      %p155 = pneg %p100
      %p156 = scmp.lt.s32.totalorder %s14, 1
      %s157 = scalar_select %p156, %s14, 1
      %s158 = smul.addr %s157, 4
      %s159 = smul.addr %s158, 8
      %s160 = scalar_lea.vmem %s3, %s159
      %p161 = scmp.lt.s32.totalorder %s14, 1
      %s162 = scalar_select %p161, %s14, 1
      %s163 = smul.addr %s162, 3
      %s164 = smul.addr %s163, 8
      %s165 = scalar_lea.vmem %s0, %s164
      %p166 = scmp.lt.s32.totalorder %s14, 1
      %s167 = scalar_select %p166, %s14, 1
      %s168 = smul.addr %s167, 4
      %s169 = smul.addr %s168, 8
      %s170 = scalar_lea.vmem %s3, %s169
      %v171 = vld [vmem:[%s165] sm:$0xff]
      %v172 = vld [vmem:[%s165 + $0x8] sm:$0xff]
      %v173 = vld [vmem:[%s165 + $0x10] sm:$0xff]
      %v174 = vld [vmem:[%s1] sm:$0xff]
      %v175 = vld [vmem:[%s1 + $0x8] sm:$0xff]
      %s176 = scalar_lea.vmem %s1, 16
      %v177 = vld [vmem:[%s176] sm:$0xff]
      %v178 = vld [vmem:[%s176 + $0x8] sm:$0xff]
      %182 = vrot.lane.b32.xlu0 %v171, 127
      %v183 = vpop.permute.xlu0 %182
      %184 = vrot.lane.b32.xlu0 %v172, 127
      %v185 = vpop.permute.xlu0 %184
      %186 = vrot.lane.b32.xlu0 %v173, 127
      %v187 = vpop.permute.xlu0 %186
      %vm188 = vcmask 1039360
      %v189 = vsel %vm188, %v183, %v185
      %v190 = vsel %vm188, %v185, %v187
      %vm193 = vcmask 64512
      %v195 = vsel %vm193, %v177, 0
      %v198 = vsel %vm193, %v178, 0
      %200 = vmatprep.subr.mxu0 %v190
      %201 = vmatpush1.msra.mxu0 %v189
      %202 = vmatprep.subr.mxu0 0.0
      %203 = vmatpush1.msra.mxu0 0.0
      %204 = vmatprep.subr.mxu0 0.0
      %205 = vmatpush1.msra.mxu0 0.0
      %206 = vmatprep.subr.mxu0 0.0
      %207 = vmatpush1.msra.mxu0 0.0
      %208 = vmatprep.subr.mxu0 0.0
      %209 = vmatpush1.msra.mxu0 0.0
      %210 = vmatprep.subr.mxu0 0.0
      %211 = vmatpush1.msra.mxu0 0.0
      %212 = vmatprep.subr.mxu0 0.0
      %213 = vmatpush1.msra.mxu0 0.0
      %214 = vmatprep.subr.mxu0 0.0
      %215 = vmatpush1.msra.mxu0 0.0
      %216 = vmatprep.subr.mxu0 0.0
      %217 = vmatpush1.msra.mxu0 0.0
      %218 = vmatprep.subr.mxu0 0.0
      %219 = vmatpush1.msra.mxu0 0.0
      %220 = vmatprep.subr.mxu0 0.0
      %221 = vmatpush1.msra.mxu0 0.0
      %222 = vmatprep.subr.mxu0 0.0
      %223 = vmatpush1.msra.mxu0 0.0
      %224 = vmatprep.subr.mxu0 0.0
      %225 = vmatpush1.msra.mxu0 0.0
      %226 = vmatprep.subr.mxu0 0.0
      %227 = vmatpush1.msra.mxu0 0.0
      %228 = vmatprep.subr.mxu0 0.0
      %229 = vmatpush1.msra.mxu0 0.0
      %230 = vmatprep.subr.mxu0 0.0
      %231 = vmatpush1.msra.mxu0 0.0
      %232 = vmatprep.subr.mxu0 0.0
      %233 = vmatpush1.msra.mxu0 0.0
      %234 = vmatprep.subr.mxu0 0.0
      %235 = vmatpush1.msra.mxu0 0.0
      %236 = vmatprep.subr.mxu0 0.0
      %237 = vmatpush1.msra.mxu0 0.0
      %238 = vmatprep.subr.mxu0 0.0
      %239 = vmatpush1.msra.mxu0 0.0
      %240 = vmatprep.subr.mxu0 0.0
      %241 = vmatpush1.msra.mxu0 0.0
      %242 = vmatprep.subr.mxu0 0.0
      %243 = vmatpush1.msra.mxu0 0.0
      %244 = vmatprep.subr.mxu0 0.0
      %245 = vmatpush1.msra.mxu0 0.0
      %246 = vmatprep.subr.mxu0 0.0
      %247 = vmatpush1.msra.mxu0 0.0
      %248 = vmatprep.subr.mxu0 0.0
      %249 = vmatpush1.msra.mxu0 0.0
      %250 = vmatprep.subr.mxu0 0.0
      %251 = vmatpush1.msra.mxu0 0.0
      %252 = vmatprep.subr.mxu0 0.0
      %253 = vmatpush1.msra.mxu0 0.0
      %254 = vmatprep.subr.mxu0 0.0
      %255 = vmatpush1.msra.mxu0 0.0
      %256 = vmatprep.subr.mxu0 0.0
      %257 = vmatpush1.msra.mxu0 0.0
      %258 = vmatprep.subr.mxu0 0.0
      %259 = vmatpush1.msra.mxu0 0.0
      %260 = vmatprep.subr.mxu0 0.0
      %261 = vmatpush1.msra.mxu0 0.0
      %262 = vmatprep.subr.mxu0 0.0
      %263 = vmatpush1.msra.mxu0 0.0
      %264 = vmatprep.mubr.f32.mxu0 0.0
      %265 = vmatmul.mubr.f32.gmra.mrb[0].mxu0 %v195
      %v266 = vpop.f32.mrb[0].mxu0
      %v267 = vadd.f32 0.0, %v266
      %v268 = vpop.f32.mrb[0].mxu0
      %v269 = vadd.f32 0.0, %v268
      %270 = vmatprep.mubr.f32.mxu0 0.0
      %271 = vmatmul.mubr.f32.gmra.mrb[0].mxu0 %v198
      %v272 = vpop.f32.mrb[0].mxu0
      %v273 = vadd.f32 0.0, %v272
      %v274 = vpop.f32.mrb[0].mxu0
      %v275 = vadd.f32 0.0, %v274
      %276 = vdwg.mxu0
      %v278 = vsel %vm193, %v174, 0
      %v281 = vsel %vm193, %v175, 0
      %283 = vmatprep.subr.mxu0 %v172
      %284 = vmatpush1.msra.mxu0 %v171
      %285 = vmatprep.subr.mxu0 0.0
      %286 = vmatpush1.msra.mxu0 0.0
      %287 = vmatprep.subr.mxu0 0.0
      %288 = vmatpush1.msra.mxu0 0.0
      %289 = vmatprep.subr.mxu0 0.0
      %290 = vmatpush1.msra.mxu0 0.0
      %291 = vmatprep.subr.mxu0 0.0
      %292 = vmatpush1.msra.mxu0 0.0
      %293 = vmatprep.subr.mxu0 0.0
      %294 = vmatpush1.msra.mxu0 0.0
      %295 = vmatprep.subr.mxu0 0.0
      %296 = vmatpush1.msra.mxu0 0.0
      %297 = vmatprep.subr.mxu0 0.0
      %298 = vmatpush1.msra.mxu0 0.0
      %299 = vmatprep.subr.mxu0 0.0
      %300 = vmatpush1.msra.mxu0 0.0
      %301 = vmatprep.subr.mxu0 0.0
      %302 = vmatpush1.msra.mxu0 0.0
      %303 = vmatprep.subr.mxu0 0.0
      %304 = vmatpush1.msra.mxu0 0.0
      %305 = vmatprep.subr.mxu0 0.0
      %306 = vmatpush1.msra.mxu0 0.0
      %307 = vmatprep.subr.mxu0 0.0
      %308 = vmatpush1.msra.mxu0 0.0
      %309 = vmatprep.subr.mxu0 0.0
      %310 = vmatpush1.msra.mxu0 0.0
      %311 = vmatprep.subr.mxu0 0.0
      %312 = vmatpush1.msra.mxu0 0.0
      %313 = vmatprep.subr.mxu0 0.0
      %314 = vmatpush1.msra.mxu0 0.0
      %315 = vmatprep.subr.mxu0 0.0
      %316 = vmatpush1.msra.mxu0 0.0
      %317 = vmatprep.subr.mxu0 0.0
      %318 = vmatpush1.msra.mxu0 0.0
      %319 = vmatprep.subr.mxu0 0.0
      %320 = vmatpush1.msra.mxu0 0.0
      %321 = vmatprep.subr.mxu0 0.0
      %322 = vmatpush1.msra.mxu0 0.0
      %323 = vmatprep.subr.mxu0 0.0
      %324 = vmatpush1.msra.mxu0 0.0
      %325 = vmatprep.subr.mxu0 0.0
      %326 = vmatpush1.msra.mxu0 0.0
      %327 = vmatprep.subr.mxu0 0.0
      %328 = vmatpush1.msra.mxu0 0.0
      %329 = vmatprep.subr.mxu0 0.0
      %330 = vmatpush1.msra.mxu0 0.0
      %331 = vmatprep.subr.mxu0 0.0
      %332 = vmatpush1.msra.mxu0 0.0
      %333 = vmatprep.subr.mxu0 0.0
      %334 = vmatpush1.msra.mxu0 0.0
      %335 = vmatprep.subr.mxu0 0.0
      %336 = vmatpush1.msra.mxu0 0.0
      %337 = vmatprep.subr.mxu0 0.0
      %338 = vmatpush1.msra.mxu0 0.0
      %339 = vmatprep.subr.mxu0 0.0
      %340 = vmatpush1.msra.mxu0 0.0
      %341 = vmatprep.subr.mxu0 0.0
      %342 = vmatpush1.msra.mxu0 0.0
      %343 = vmatprep.subr.mxu0 0.0
      %344 = vmatpush1.msra.mxu0 0.0
      %345 = vmatprep.subr.mxu0 0.0
      %346 = vmatpush1.msra.mxu0 0.0
      %347 = vmatprep.mubr.f32.mxu0 0.0
      %348 = vmatmul.mubr.f32.gmra.mrb[0].mxu0 %v278
      %v349 = vpop.f32.mrb[0].mxu0
      %v350 = vadd.f32 %v267, %v349
      %v351 = vpop.f32.mrb[0].mxu0
      %v352 = vadd.f32 %v269, %v351
      %353 = vmatprep.mubr.f32.mxu0 0.0
      %354 = vmatmul.mubr.f32.gmra.mrb[0].mxu0 %v281
      %v355 = vpop.f32.mrb[0].mxu0
      %v356 = vadd.f32 %v273, %v355
      %v357 = vpop.f32.mrb[0].mxu0
      %v358 = vadd.f32 %v275, %v357
      %359 = vdwg.mxu0
      %s360 = scalar_lea.vmem %s1, 32
      %v361 = vld [vmem:[%s360] sm:$0xff]
      %v362 = vld [vmem:[%s360 + $0x8] sm:$0xff]
      %363 = vrot.lane.b32.xlu0 %v171, 126
      %v364 = vpop.permute.xlu0 %363
      %365 = vrot.lane.b32.xlu0 %v172, 126
      %v366 = vpop.permute.xlu0 %365
      %367 = vrot.lane.b32.xlu0 %v173, 126
      %v368 = vpop.permute.xlu0 %367
      %vm369 = vcmask 1031168
      %v370 = vsel %vm369, %v364, %v366
      %v371 = vsel %vm369, %v366, %v368
      %v375 = vsel %vm193, %v361, 0
      %v378 = vsel %vm193, %v362, 0
      %380 = vmatprep.subr.mxu0 %v371
      %381 = vmatpush1.msra.mxu0 %v370
      %382 = vmatprep.subr.mxu0 0.0
      %383 = vmatpush1.msra.mxu0 0.0
      %384 = vmatprep.subr.mxu0 0.0
      %385 = vmatpush1.msra.mxu0 0.0
      %386 = vmatprep.subr.mxu0 0.0
      %387 = vmatpush1.msra.mxu0 0.0
      %388 = vmatprep.subr.mxu0 0.0
      %389 = vmatpush1.msra.mxu0 0.0
      %390 = vmatprep.subr.mxu0 0.0
      %391 = vmatpush1.msra.mxu0 0.0
      %392 = vmatprep.subr.mxu0 0.0
      %393 = vmatpush1.msra.mxu0 0.0
      %394 = vmatprep.subr.mxu0 0.0
      %395 = vmatpush1.msra.mxu0 0.0
      %396 = vmatprep.subr.mxu0 0.0
      %397 = vmatpush1.msra.mxu0 0.0
      %398 = vmatprep.subr.mxu0 0.0
      %399 = vmatpush1.msra.mxu0 0.0
      %400 = vmatprep.subr.mxu0 0.0
      %401 = vmatpush1.msra.mxu0 0.0
      %402 = vmatprep.subr.mxu0 0.0
      %403 = vmatpush1.msra.mxu0 0.0
      %404 = vmatprep.subr.mxu0 0.0
      %405 = vmatpush1.msra.mxu0 0.0
      %406 = vmatprep.subr.mxu0 0.0
      %407 = vmatpush1.msra.mxu0 0.0
      %408 = vmatprep.subr.mxu0 0.0
      %409 = vmatpush1.msra.mxu0 0.0
      %410 = vmatprep.subr.mxu0 0.0
      %411 = vmatpush1.msra.mxu0 0.0
      %412 = vmatprep.subr.mxu0 0.0
      %413 = vmatpush1.msra.mxu0 0.0
      %414 = vmatprep.subr.mxu0 0.0
      %415 = vmatpush1.msra.mxu0 0.0
      %416 = vmatprep.subr.mxu0 0.0
      %417 = vmatpush1.msra.mxu0 0.0
      %418 = vmatprep.subr.mxu0 0.0
      %419 = vmatpush1.msra.mxu0 0.0
      %420 = vmatprep.subr.mxu0 0.0
      %421 = vmatpush1.msra.mxu0 0.0
      %422 = vmatprep.subr.mxu0 0.0
      %423 = vmatpush1.msra.mxu0 0.0
      %424 = vmatprep.subr.mxu0 0.0
      %425 = vmatpush1.msra.mxu0 0.0
      %426 = vmatprep.subr.mxu0 0.0
      %427 = vmatpush1.msra.mxu0 0.0
      %428 = vmatprep.subr.mxu0 0.0
      %429 = vmatpush1.msra.mxu0 0.0
      %430 = vmatprep.subr.mxu0 0.0
      %431 = vmatpush1.msra.mxu0 0.0
      %432 = vmatprep.subr.mxu0 0.0
      %433 = vmatpush1.msra.mxu0 0.0
      %434 = vmatprep.subr.mxu0 0.0
      %435 = vmatpush1.msra.mxu0 0.0
      %436 = vmatprep.subr.mxu0 0.0
      %437 = vmatpush1.msra.mxu0 0.0
      %438 = vmatprep.subr.mxu0 0.0
      %439 = vmatpush1.msra.mxu0 0.0
      %440 = vmatprep.subr.mxu0 0.0
      %441 = vmatpush1.msra.mxu0 0.0
      %442 = vmatprep.subr.mxu0 0.0
      %443 = vmatpush1.msra.mxu0 0.0
      %444 = vmatprep.mubr.f32.mxu0 0.0
      %445 = vmatmul.mubr.f32.gmra.mrb[0].mxu0 %v375
      %v446 = vpop.f32.mrb[0].mxu0
      %v447 = vadd.f32 0.0, %v446
      %v448 = vpop.f32.mrb[0].mxu0
      %v449 = vadd.f32 0.0, %v448
      %450 = vmatprep.mubr.f32.mxu0 0.0
      %451 = vmatmul.mubr.f32.gmra.mrb[0].mxu0 %v378
      %v452 = vpop.f32.mrb[0].mxu0
      %v453 = vadd.f32 0.0, %v452
      %v454 = vpop.f32.mrb[0].mxu0
      %v455 = vadd.f32 0.0, %v454
      %456 = vdwg.mxu0
      %v457 = vadd.f32 %v350, %v447
      %v458 = vadd.f32 %v352, %v449
      %v459 = vadd.f32 %v356, %v453
      %v460 = vadd.f32 %v358, %v455
      %s461 = scalar_lea.vmem %s1, 48
      %v462 = vld [vmem:[%s461] sm:$0xff]
      %v463 = vld [vmem:[%s461 + $0x8] sm:$0xff]
      %464 = vrot.lane.b32.xlu0 %v171, 125
      %v465 = vpop.permute.xlu0 %464
      %466 = vrot.lane.b32.xlu0 %v172, 125
      %v467 = vpop.permute.xlu0 %466
      %468 = vrot.lane.b32.xlu0 %v173, 125
      %v469 = vpop.permute.xlu0 %468
      %vm470 = vcmask 1022976
      %v471 = vsel %vm470, %v465, %v467
      %v472 = vsel %vm470, %v467, %v469
      %v476 = vsel %vm193, %v462, 0
      %v479 = vsel %vm193, %v463, 0
      %481 = vmatprep.subr.mxu0 %v472
      %482 = vmatpush1.msra.mxu0 %v471
      %483 = vmatprep.subr.mxu0 0.0
      %484 = vmatpush1.msra.mxu0 0.0
      %485 = vmatprep.subr.mxu0 0.0
      %486 = vmatpush1.msra.mxu0 0.0
      %487 = vmatprep.subr.mxu0 0.0
      %488 = vmatpush1.msra.mxu0 0.0
      %489 = vmatprep.subr.mxu0 0.0
      %490 = vmatpush1.msra.mxu0 0.0
      %491 = vmatprep.subr.mxu0 0.0
      %492 = vmatpush1.msra.mxu0 0.0
      %493 = vmatprep.subr.mxu0 0.0
      %494 = vmatpush1.msra.mxu0 0.0
      %495 = vmatprep.subr.mxu0 0.0
      %496 = vmatpush1.msra.mxu0 0.0
      %497 = vmatprep.subr.mxu0 0.0
      %498 = vmatpush1.msra.mxu0 0.0
      %499 = vmatprep.subr.mxu0 0.0
      %500 = vmatpush1.msra.mxu0 0.0
      %501 = vmatprep.subr.mxu0 0.0
      %502 = vmatpush1.msra.mxu0 0.0
      %503 = vmatprep.subr.mxu0 0.0
      %504 = vmatpush1.msra.mxu0 0.0
      %505 = vmatprep.subr.mxu0 0.0
      %506 = vmatpush1.msra.mxu0 0.0
      %507 = vmatprep.subr.mxu0 0.0
      %508 = vmatpush1.msra.mxu0 0.0
      %509 = vmatprep.subr.mxu0 0.0
      %510 = vmatpush1.msra.mxu0 0.0
      %511 = vmatprep.subr.mxu0 0.0
      %512 = vmatpush1.msra.mxu0 0.0
      %513 = vmatprep.subr.mxu0 0.0
      %514 = vmatpush1.msra.mxu0 0.0
      %515 = vmatprep.subr.mxu0 0.0
      %516 = vmatpush1.msra.mxu0 0.0
      %517 = vmatprep.subr.mxu0 0.0
      %518 = vmatpush1.msra.mxu0 0.0
      %519 = vmatprep.subr.mxu0 0.0
      %520 = vmatpush1.msra.mxu0 0.0
      %521 = vmatprep.subr.mxu0 0.0
      %522 = vmatpush1.msra.mxu0 0.0
      %523 = vmatprep.subr.mxu0 0.0
      %524 = vmatpush1.msra.mxu0 0.0
      %525 = vmatprep.subr.mxu0 0.0
      %526 = vmatpush1.msra.mxu0 0.0
      %527 = vmatprep.subr.mxu0 0.0
      %528 = vmatpush1.msra.mxu0 0.0
      %529 = vmatprep.subr.mxu0 0.0
      %530 = vmatpush1.msra.mxu0 0.0
      %531 = vmatprep.subr.mxu0 0.0
      %532 = vmatpush1.msra.mxu0 0.0
      %533 = vmatprep.subr.mxu0 0.0
      %534 = vmatpush1.msra.mxu0 0.0
      %535 = vmatprep.subr.mxu0 0.0
      %536 = vmatpush1.msra.mxu0 0.0
      %537 = vmatprep.subr.mxu0 0.0
      %538 = vmatpush1.msra.mxu0 0.0
      %539 = vmatprep.subr.mxu0 0.0
      %540 = vmatpush1.msra.mxu0 0.0
      %541 = vmatprep.subr.mxu0 0.0
      %542 = vmatpush1.msra.mxu0 0.0
      %543 = vmatprep.subr.mxu0 0.0
      %544 = vmatpush1.msra.mxu0 0.0
      %545 = vmatprep.mubr.f32.mxu0 0.0
      %546 = vmatmul.mubr.f32.gmra.mrb[0].mxu0 %v476
      %v547 = vpop.f32.mrb[0].mxu0
      %v548 = vadd.f32 0.0, %v547
      %v549 = vpop.f32.mrb[0].mxu0
      %v550 = vadd.f32 0.0, %v549
      %551 = vmatprep.mubr.f32.mxu0 0.0
      %552 = vmatmul.mubr.f32.gmra.mrb[0].mxu0 %v479
      %v553 = vpop.f32.mrb[0].mxu0
      %v554 = vadd.f32 0.0, %v553
      %v555 = vpop.f32.mrb[0].mxu0
      %v556 = vadd.f32 0.0, %v555
      %557 = vdwg.mxu0
      %v558 = vadd.f32 %v457, %v548
      %v559 = vadd.f32 %v458, %v550
      %v560 = vadd.f32 %v459, %v554
      %v561 = vadd.f32 %v460, %v556
      %s562 = scalar_lea.vmem %s1, 64
      %v563 = vld [vmem:[%s562] sm:$0xff]
      %v564 = vld [vmem:[%s562 + $0x8] sm:$0xff]
      %565 = vrot.lane.b32.xlu0 %v171, 124
      %v566 = vpop.permute.xlu0 %565
      %567 = vrot.lane.b32.xlu0 %v172, 124
      %v568 = vpop.permute.xlu0 %567
      %569 = vrot.lane.b32.xlu0 %v173, 124
      %v570 = vpop.permute.xlu0 %569
      %vm571 = vcmask 1014784
      %v572 = vsel %vm571, %v566, %v568
      %v573 = vsel %vm571, %v568, %v570
      %v577 = vsel %vm193, %v563, 0
      %v580 = vsel %vm193, %v564, 0
      %582 = vmatprep.subr.mxu0 %v573
      %583 = vmatpush1.msra.mxu0 %v572
      %584 = vmatprep.subr.mxu0 0.0
      %585 = vmatpush1.msra.mxu0 0.0
      %586 = vmatprep.subr.mxu0 0.0
      %587 = vmatpush1.msra.mxu0 0.0
      %588 = vmatprep.subr.mxu0 0.0
      %589 = vmatpush1.msra.mxu0 0.0
      %590 = vmatprep.subr.mxu0 0.0
      %591 = vmatpush1.msra.mxu0 0.0
      %592 = vmatprep.subr.mxu0 0.0
      %593 = vmatpush1.msra.mxu0 0.0
      %594 = vmatprep.subr.mxu0 0.0
      %595 = vmatpush1.msra.mxu0 0.0
      %596 = vmatprep.subr.mxu0 0.0
      %597 = vmatpush1.msra.mxu0 0.0
      %598 = vmatprep.subr.mxu0 0.0
      %599 = vmatpush1.msra.mxu0 0.0
      %600 = vmatprep.subr.mxu0 0.0
      %601 = vmatpush1.msra.mxu0 0.0
      %602 = vmatprep.subr.mxu0 0.0
      %603 = vmatpush1.msra.mxu0 0.0
      %604 = vmatprep.subr.mxu0 0.0
      %605 = vmatpush1.msra.mxu0 0.0
      %606 = vmatprep.subr.mxu0 0.0
      %607 = vmatpush1.msra.mxu0 0.0
      %608 = vmatprep.subr.mxu0 0.0
      %609 = vmatpush1.msra.mxu0 0.0
      %610 = vmatprep.subr.mxu0 0.0
      %611 = vmatpush1.msra.mxu0 0.0
      %612 = vmatprep.subr.mxu0 0.0
      %613 = vmatpush1.msra.mxu0 0.0
      %614 = vmatprep.subr.mxu0 0.0
      %615 = vmatpush1.msra.mxu0 0.0
      %616 = vmatprep.subr.mxu0 0.0
      %617 = vmatpush1.msra.mxu0 0.0
      %618 = vmatprep.subr.mxu0 0.0
      %619 = vmatpush1.msra.mxu0 0.0
      %620 = vmatprep.subr.mxu0 0.0
      %621 = vmatpush1.msra.mxu0 0.0
      %622 = vmatprep.subr.mxu0 0.0
      %623 = vmatpush1.msra.mxu0 0.0
      %624 = vmatprep.subr.mxu0 0.0
      %625 = vmatpush1.msra.mxu0 0.0
      %626 = vmatprep.subr.mxu0 0.0
      %627 = vmatpush1.msra.mxu0 0.0
      %628 = vmatprep.subr.mxu0 0.0
      %629 = vmatpush1.msra.mxu0 0.0
      %630 = vmatprep.subr.mxu0 0.0
      %631 = vmatpush1.msra.mxu0 0.0
      %632 = vmatprep.subr.mxu0 0.0
      %633 = vmatpush1.msra.mxu0 0.0
      %634 = vmatprep.subr.mxu0 0.0
      %635 = vmatpush1.msra.mxu0 0.0
      %636 = vmatprep.subr.mxu0 0.0
      %637 = vmatpush1.msra.mxu0 0.0
      %638 = vmatprep.subr.mxu0 0.0
      %639 = vmatpush1.msra.mxu0 0.0
      %640 = vmatprep.subr.mxu0 0.0
      %641 = vmatpush1.msra.mxu0 0.0
      %642 = vmatprep.subr.mxu0 0.0
      %643 = vmatpush1.msra.mxu0 0.0
      %644 = vmatprep.subr.mxu0 0.0
      %645 = vmatpush1.msra.mxu0 0.0
      %646 = vmatprep.mubr.f32.mxu0 0.0
      %647 = vmatmul.mubr.f32.gmra.mrb[0].mxu0 %v577
      %v648 = vpop.f32.mrb[0].mxu0
      %v649 = vadd.f32 0.0, %v648
      %v650 = vpop.f32.mrb[0].mxu0
      %v651 = vadd.f32 0.0, %v650
      %652 = vmatprep.mubr.f32.mxu0 0.0
      %653 = vmatmul.mubr.f32.gmra.mrb[0].mxu0 %v580
      %v654 = vpop.f32.mrb[0].mxu0
      %v655 = vadd.f32 0.0, %v654
      %v656 = vpop.f32.mrb[0].mxu0
      %v657 = vadd.f32 0.0, %v656
      %658 = vdwg.mxu0
      %v659 = vadd.f32 %v558, %v649
      %v660 = vadd.f32 %v559, %v651
      %v661 = vadd.f32 %v560, %v655
      %v662 = vadd.f32 %v561, %v657
      %s663 = scalar_lea.vmem %s1, 80
      %v664 = vld [vmem:[%s663] sm:$0xff]
      %v665 = vld [vmem:[%s663 + $0x8] sm:$0xff]
      %666 = vrot.lane.b32.xlu0 %v171, 112
      %v667 = vpop.permute.xlu0 %666
      %668 = vrot.lane.b32.xlu0 %v172, 112
      %v669 = vpop.permute.xlu0 %668
      %670 = vrot.lane.b32.xlu0 %v173, 112
      %v671 = vpop.permute.xlu0 %670
      %vm672 = vcmask 916480
      %v673 = vsel %vm672, %v667, %v669
      %v674 = vsel %vm672, %v669, %v671
      %v678 = vsel %vm193, %v664, 0
      %v681 = vsel %vm193, %v665, 0
      %683 = vmatprep.subr.mxu0 %v674
      %684 = vmatpush1.msra.mxu0 %v673
      %685 = vmatprep.subr.mxu0 0.0
      %686 = vmatpush1.msra.mxu0 0.0
      %687 = vmatprep.subr.mxu0 0.0
      %688 = vmatpush1.msra.mxu0 0.0
      %689 = vmatprep.subr.mxu0 0.0
      %690 = vmatpush1.msra.mxu0 0.0
      %691 = vmatprep.subr.mxu0 0.0
      %692 = vmatpush1.msra.mxu0 0.0
      %693 = vmatprep.subr.mxu0 0.0
      %694 = vmatpush1.msra.mxu0 0.0
      %695 = vmatprep.subr.mxu0 0.0
      %696 = vmatpush1.msra.mxu0 0.0
      %697 = vmatprep.subr.mxu0 0.0
      %698 = vmatpush1.msra.mxu0 0.0
      %699 = vmatprep.subr.mxu0 0.0
      %700 = vmatpush1.msra.mxu0 0.0
      %701 = vmatprep.subr.mxu0 0.0
      %702 = vmatpush1.msra.mxu0 0.0
      %703 = vmatprep.subr.mxu0 0.0
      %704 = vmatpush1.msra.mxu0 0.0
      %705 = vmatprep.subr.mxu0 0.0
      %706 = vmatpush1.msra.mxu0 0.0
      %707 = vmatprep.subr.mxu0 0.0
      %708 = vmatpush1.msra.mxu0 0.0
      %709 = vmatprep.subr.mxu0 0.0
      %710 = vmatpush1.msra.mxu0 0.0
      %711 = vmatprep.subr.mxu0 0.0
      %712 = vmatpush1.msra.mxu0 0.0
      %713 = vmatprep.subr.mxu0 0.0
      %714 = vmatpush1.msra.mxu0 0.0
      %715 = vmatprep.subr.mxu0 0.0
      %716 = vmatpush1.msra.mxu0 0.0
      %717 = vmatprep.subr.mxu0 0.0
      %718 = vmatpush1.msra.mxu0 0.0
      %719 = vmatprep.subr.mxu0 0.0
      %720 = vmatpush1.msra.mxu0 0.0
      %721 = vmatprep.subr.mxu0 0.0
      %722 = vmatpush1.msra.mxu0 0.0
      %723 = vmatprep.subr.mxu0 0.0
      %724 = vmatpush1.msra.mxu0 0.0
      %725 = vmatprep.subr.mxu0 0.0
      %726 = vmatpush1.msra.mxu0 0.0
      %727 = vmatprep.subr.mxu0 0.0
      %728 = vmatpush1.msra.mxu0 0.0
      %729 = vmatprep.subr.mxu0 0.0
      %730 = vmatpush1.msra.mxu0 0.0
      %731 = vmatprep.subr.mxu0 0.0
      %732 = vmatpush1.msra.mxu0 0.0
      %733 = vmatprep.subr.mxu0 0.0
      %734 = vmatpush1.msra.mxu0 0.0
      %735 = vmatprep.subr.mxu0 0.0
      %736 = vmatpush1.msra.mxu0 0.0
      %737 = vmatprep.subr.mxu0 0.0
      %738 = vmatpush1.msra.mxu0 0.0
      %739 = vmatprep.subr.mxu0 0.0
      %740 = vmatpush1.msra.mxu0 0.0
      %741 = vmatprep.subr.mxu0 0.0
      %742 = vmatpush1.msra.mxu0 0.0
      %743 = vmatprep.subr.mxu0 0.0
      %744 = vmatpush1.msra.mxu0 0.0
      %745 = vmatprep.subr.mxu0 0.0
      %746 = vmatpush1.msra.mxu0 0.0
      %747 = vmatprep.mubr.f32.mxu0 0.0
      %748 = vmatmul.mubr.f32.gmra.mrb[0].mxu0 %v678
      %v749 = vpop.f32.mrb[0].mxu0
      %v750 = vadd.f32 0.0, %v749
      %v751 = vpop.f32.mrb[0].mxu0
      %v752 = vadd.f32 0.0, %v751
      %753 = vmatprep.mubr.f32.mxu0 0.0
      %754 = vmatmul.mubr.f32.gmra.mrb[0].mxu0 %v681
      %v755 = vpop.f32.mrb[0].mxu0
      %v756 = vadd.f32 0.0, %v755
      %v757 = vpop.f32.mrb[0].mxu0
      %v758 = vadd.f32 0.0, %v757
      %759 = vdwg.mxu0
      %v760 = vadd.f32 %v659, %v750
      %v761 = vadd.f32 %v660, %v752
      %v762 = vadd.f32 %v661, %v756
      %v763 = vadd.f32 %v662, %v758
      %s764 = scalar_lea.vmem %s1, 96
      %v765 = vld [vmem:[%s764] sm:$0xff]
      %v766 = vld [vmem:[%s764 + $0x8] sm:$0xff]
      %767 = vrot.lane.b32.xlu0 %v171, 111
      %v768 = vpop.permute.xlu0 %767
      %769 = vrot.lane.b32.xlu0 %v172, 111
      %v770 = vpop.permute.xlu0 %769
      %771 = vrot.lane.b32.xlu0 %v173, 111
      %v772 = vpop.permute.xlu0 %771
      %vm773 = vcmask 908288
      %v774 = vsel %vm773, %v768, %v770
      %v775 = vsel %vm773, %v770, %v772
      %v779 = vsel %vm193, %v765, 0
      %v782 = vsel %vm193, %v766, 0
      %784 = vmatprep.subr.mxu0 %v775
      %785 = vmatpush1.msra.mxu0 %v774
      %786 = vmatprep.subr.mxu0 0.0
      %787 = vmatpush1.msra.mxu0 0.0
      %788 = vmatprep.subr.mxu0 0.0
      %789 = vmatpush1.msra.mxu0 0.0
      %790 = vmatprep.subr.mxu0 0.0
      %791 = vmatpush1.msra.mxu0 0.0
      %792 = vmatprep.subr.mxu0 0.0
      %793 = vmatpush1.msra.mxu0 0.0
      %794 = vmatprep.subr.mxu0 0.0
      %795 = vmatpush1.msra.mxu0 0.0
      %796 = vmatprep.subr.mxu0 0.0
      %797 = vmatpush1.msra.mxu0 0.0
      %798 = vmatprep.subr.mxu0 0.0
      %799 = vmatpush1.msra.mxu0 0.0
      %800 = vmatprep.subr.mxu0 0.0
      %801 = vmatpush1.msra.mxu0 0.0
      %802 = vmatprep.subr.mxu0 0.0
      %803 = vmatpush1.msra.mxu0 0.0
      %804 = vmatprep.subr.mxu0 0.0
      %805 = vmatpush1.msra.mxu0 0.0
      %806 = vmatprep.subr.mxu0 0.0
      %807 = vmatpush1.msra.mxu0 0.0
      %808 = vmatprep.subr.mxu0 0.0
      %809 = vmatpush1.msra.mxu0 0.0
      %810 = vmatprep.subr.mxu0 0.0
      %811 = vmatpush1.msra.mxu0 0.0
      %812 = vmatprep.subr.mxu0 0.0
      %813 = vmatpush1.msra.mxu0 0.0
      %814 = vmatprep.subr.mxu0 0.0
      %815 = vmatpush1.msra.mxu0 0.0
      %816 = vmatprep.subr.mxu0 0.0
      %817 = vmatpush1.msra.mxu0 0.0
      %818 = vmatprep.subr.mxu0 0.0
      %819 = vmatpush1.msra.mxu0 0.0
      %820 = vmatprep.subr.mxu0 0.0
      %821 = vmatpush1.msra.mxu0 0.0
      %822 = vmatprep.subr.mxu0 0.0
      %823 = vmatpush1.msra.mxu0 0.0
      %824 = vmatprep.subr.mxu0 0.0
      %825 = vmatpush1.msra.mxu0 0.0
      %826 = vmatprep.subr.mxu0 0.0
      %827 = vmatpush1.msra.mxu0 0.0
      %828 = vmatprep.subr.mxu0 0.0
      %829 = vmatpush1.msra.mxu0 0.0
      %830 = vmatprep.subr.mxu0 0.0
      %831 = vmatpush1.msra.mxu0 0.0
      %832 = vmatprep.subr.mxu0 0.0
      %833 = vmatpush1.msra.mxu0 0.0
      %834 = vmatprep.subr.mxu0 0.0
      %835 = vmatpush1.msra.mxu0 0.0
      %836 = vmatprep.subr.mxu0 0.0
      %837 = vmatpush1.msra.mxu0 0.0
      %838 = vmatprep.subr.mxu0 0.0
      %839 = vmatpush1.msra.mxu0 0.0
      %840 = vmatprep.subr.mxu0 0.0
      %841 = vmatpush1.msra.mxu0 0.0
      %842 = vmatprep.subr.mxu0 0.0
      %843 = vmatpush1.msra.mxu0 0.0
      %844 = vmatprep.subr.mxu0 0.0
      %845 = vmatpush1.msra.mxu0 0.0
      %846 = vmatprep.subr.mxu0 0.0
      %847 = vmatpush1.msra.mxu0 0.0
      %848 = vmatprep.mubr.f32.mxu0 0.0
      %849 = vmatmul.mubr.f32.gmra.mrb[0].mxu0 %v779
      %v850 = vpop.f32.mrb[0].mxu0
      %v851 = vadd.f32 0.0, %v850
      %v852 = vpop.f32.mrb[0].mxu0
      %v853 = vadd.f32 0.0, %v852
      %854 = vmatprep.mubr.f32.mxu0 0.0
      %855 = vmatmul.mubr.f32.gmra.mrb[0].mxu0 %v782
      %v856 = vpop.f32.mrb[0].mxu0
      %v857 = vadd.f32 0.0, %v856
      %v858 = vpop.f32.mrb[0].mxu0
      %v859 = vadd.f32 0.0, %v858
      %860 = vdwg.mxu0
      %v861 = vadd.f32 %v760, %v851
      %v862 = vadd.f32 %v761, %v853
      %v863 = vadd.f32 %v762, %v857
      %v864 = vadd.f32 %v763, %v859
      %s865 = scalar_lea.vmem %s1, 112
      %v866 = vld [vmem:[%s865] sm:$0xff]
      %v867 = vld [vmem:[%s865 + $0x8] sm:$0xff]
      %868 = vrot.lane.b32.xlu0 %v171, 110
      %v869 = vpop.permute.xlu0 %868
      %870 = vrot.lane.b32.xlu0 %v172, 110
      %v871 = vpop.permute.xlu0 %870
      %872 = vrot.lane.b32.xlu0 %v173, 110
      %v873 = vpop.permute.xlu0 %872
      %vm874 = vcmask 900096
      %v875 = vsel %vm874, %v869, %v871
      %v876 = vsel %vm874, %v871, %v873
      %v880 = vsel %vm193, %v866, 0
      %v883 = vsel %vm193, %v867, 0
      %885 = vmatprep.subr.mxu0 %v876
      %886 = vmatpush1.msra.mxu0 %v875
      %887 = vmatprep.subr.mxu0 0.0
      %888 = vmatpush1.msra.mxu0 0.0
      %889 = vmatprep.subr.mxu0 0.0
      %890 = vmatpush1.msra.mxu0 0.0
      %891 = vmatprep.subr.mxu0 0.0
      %892 = vmatpush1.msra.mxu0 0.0
      %893 = vmatprep.subr.mxu0 0.0
      %894 = vmatpush1.msra.mxu0 0.0
      %895 = vmatprep.subr.mxu0 0.0
      %896 = vmatpush1.msra.mxu0 0.0
      %897 = vmatprep.subr.mxu0 0.0
      %898 = vmatpush1.msra.mxu0 0.0
      %899 = vmatprep.subr.mxu0 0.0
      %900 = vmatpush1.msra.mxu0 0.0
      %901 = vmatprep.subr.mxu0 0.0
      %902 = vmatpush1.msra.mxu0 0.0
      %903 = vmatprep.subr.mxu0 0.0
      %904 = vmatpush1.msra.mxu0 0.0
      %905 = vmatprep.subr.mxu0 0.0
      %906 = vmatpush1.msra.mxu0 0.0
      %907 = vmatprep.subr.mxu0 0.0
      %908 = vmatpush1.msra.mxu0 0.0
      %909 = vmatprep.subr.mxu0 0.0
      %910 = vmatpush1.msra.mxu0 0.0
      %911 = vmatprep.subr.mxu0 0.0
      %912 = vmatpush1.msra.mxu0 0.0
      %913 = vmatprep.subr.mxu0 0.0
      %914 = vmatpush1.msra.mxu0 0.0
      %915 = vmatprep.subr.mxu0 0.0
      %916 = vmatpush1.msra.mxu0 0.0
      %917 = vmatprep.subr.mxu0 0.0
      %918 = vmatpush1.msra.mxu0 0.0
      %919 = vmatprep.subr.mxu0 0.0
      %920 = vmatpush1.msra.mxu0 0.0
      %921 = vmatprep.subr.mxu0 0.0
      %922 = vmatpush1.msra.mxu0 0.0
      %923 = vmatprep.subr.mxu0 0.0
      %924 = vmatpush1.msra.mxu0 0.0
      %925 = vmatprep.subr.mxu0 0.0
      %926 = vmatpush1.msra.mxu0 0.0
      %927 = vmatprep.subr.mxu0 0.0
      %928 = vmatpush1.msra.mxu0 0.0
      %929 = vmatprep.subr.mxu0 0.0
      %930 = vmatpush1.msra.mxu0 0.0
      %931 = vmatprep.subr.mxu0 0.0
      %932 = vmatpush1.msra.mxu0 0.0
      %933 = vmatprep.subr.mxu0 0.0
      %934 = vmatpush1.msra.mxu0 0.0
      %935 = vmatprep.subr.mxu0 0.0
      %936 = vmatpush1.msra.mxu0 0.0
      %937 = vmatprep.subr.mxu0 0.0
      %938 = vmatpush1.msra.mxu0 0.0
      %939 = vmatprep.subr.mxu0 0.0
      %940 = vmatpush1.msra.mxu0 0.0
      %941 = vmatprep.subr.mxu0 0.0
      %942 = vmatpush1.msra.mxu0 0.0
      %943 = vmatprep.subr.mxu0 0.0
      %944 = vmatpush1.msra.mxu0 0.0
      %945 = vmatprep.subr.mxu0 0.0
      %946 = vmatpush1.msra.mxu0 0.0
      %947 = vmatprep.subr.mxu0 0.0
      %948 = vmatpush1.msra.mxu0 0.0
      %949 = vmatprep.mubr.f32.mxu0 0.0
      %950 = vmatmul.mubr.f32.gmra.mrb[0].mxu0 %v880
      %v951 = vpop.f32.mrb[0].mxu0
      %v952 = vadd.f32 0.0, %v951
      %v953 = vpop.f32.mrb[0].mxu0
      %v954 = vadd.f32 0.0, %v953
      %955 = vmatprep.mubr.f32.mxu0 0.0
      %956 = vmatmul.mubr.f32.gmra.mrb[0].mxu0 %v883
      %v957 = vpop.f32.mrb[0].mxu0
      %v958 = vadd.f32 0.0, %v957
      %v959 = vpop.f32.mrb[0].mxu0
      %v960 = vadd.f32 0.0, %v959
      %961 = vdwg.mxu0
      %v962 = vadd.f32 %v861, %v952
      %v963 = vadd.f32 %v862, %v954
      %v964 = vadd.f32 %v863, %v958
      %v965 = vadd.f32 %v864, %v960
      %s966 = scalar_lea.vmem %s1, 128
      %v967 = vld [vmem:[%s966] sm:$0xff]
      %v968 = vld [vmem:[%s966 + $0x8] sm:$0xff]
      %969 = vrot.lane.b32.xlu0 %v171, 109
      %v970 = vpop.permute.xlu0 %969
      %971 = vrot.lane.b32.xlu0 %v172, 109
      %v972 = vpop.permute.xlu0 %971
      %973 = vrot.lane.b32.xlu0 %v173, 109
      %v974 = vpop.permute.xlu0 %973
      %vm975 = vcmask 891904
      %v976 = vsel %vm975, %v970, %v972
      %v977 = vsel %vm975, %v972, %v974
      %v981 = vsel %vm193, %v967, 0
      %v984 = vsel %vm193, %v968, 0
      %986 = vmatprep.subr.mxu0 %v977
      %987 = vmatpush1.msra.mxu0 %v976
      %988 = vmatprep.subr.mxu0 0.0
      %989 = vmatpush1.msra.mxu0 0.0
      %990 = vmatprep.subr.mxu0 0.0
      %991 = vmatpush1.msra.mxu0 0.0
      %992 = vmatprep.subr.mxu0 0.0
      %993 = vmatpush1.msra.mxu0 0.0
      %994 = vmatprep.subr.mxu0 0.0
      %995 = vmatpush1.msra.mxu0 0.0
      %996 = vmatprep.subr.mxu0 0.0
      %997 = vmatpush1.msra.mxu0 0.0
      %998 = vmatprep.subr.mxu0 0.0
      %999 = vmatpush1.msra.mxu0 0.0
      %1000 = vmatprep.subr.mxu0 0.0
      %1001 = vmatpush1.msra.mxu0 0.0
      %1002 = vmatprep.subr.mxu0 0.0
      %1003 = vmatpush1.msra.mxu0 0.0
      %1004 = vmatprep.subr.mxu0 0.0
      %1005 = vmatpush1.msra.mxu0 0.0
      %1006 = vmatprep.subr.mxu0 0.0
      %1007 = vmatpush1.msra.mxu0 0.0
      %1008 = vmatprep.subr.mxu0 0.0
      %1009 = vmatpush1.msra.mxu0 0.0
      %1010 = vmatprep.subr.mxu0 0.0
      %1011 = vmatpush1.msra.mxu0 0.0
      %1012 = vmatprep.subr.mxu0 0.0
      %1013 = vmatpush1.msra.mxu0 0.0
      %1014 = vmatprep.subr.mxu0 0.0
      %1015 = vmatpush1.msra.mxu0 0.0
      %1016 = vmatprep.subr.mxu0 0.0
      %1017 = vmatpush1.msra.mxu0 0.0
      %1018 = vmatprep.subr.mxu0 0.0
      %1019 = vmatpush1.msra.mxu0 0.0
      %1020 = vmatprep.subr.mxu0 0.0
      %1021 = vmatpush1.msra.mxu0 0.0
      %1022 = vmatprep.subr.mxu0 0.0
      %1023 = vmatpush1.msra.mxu0 0.0
      %1024 = vmatprep.subr.mxu0 0.0
      %1025 = vmatpush1.msra.mxu0 0.0
      %1026 = vmatprep.subr.mxu0 0.0
      %1027 = vmatpush1.msra.mxu0 0.0
      %1028 = vmatprep.subr.mxu0 0.0
      %1029 = vmatpush1.msra.mxu0 0.0
      %1030 = vmatprep.subr.mxu0 0.0
      %1031 = vmatpush1.msra.mxu0 0.0
      %1032 = vmatprep.subr.mxu0 0.0
      %1033 = vmatpush1.msra.mxu0 0.0
      %1034 = vmatprep.subr.mxu0 0.0
      %1035 = vmatpush1.msra.mxu0 0.0
      %1036 = vmatprep.subr.mxu0 0.0
      %1037 = vmatpush1.msra.mxu0 0.0
      %1038 = vmatprep.subr.mxu0 0.0
      %1039 = vmatpush1.msra.mxu0 0.0
      %1040 = vmatprep.subr.mxu0 0.0
      %1041 = vmatpush1.msra.mxu0 0.0
      %1042 = vmatprep.subr.mxu0 0.0
      %1043 = vmatpush1.msra.mxu0 0.0
      %1044 = vmatprep.subr.mxu0 0.0
      %1045 = vmatpush1.msra.mxu0 0.0
      %1046 = vmatprep.subr.mxu0 0.0
      %1047 = vmatpush1.msra.mxu0 0.0
      %1048 = vmatprep.subr.mxu0 0.0
      %1049 = vmatpush1.msra.mxu0 0.0
      %1050 = vmatprep.mubr.f32.mxu0 0.0
      %1051 = vmatmul.mubr.f32.gmra.mrb[0].mxu0 %v981
      %v1052 = vpop.f32.mrb[0].mxu0
      %v1053 = vadd.f32 0.0, %v1052
      %v1054 = vpop.f32.mrb[0].mxu0
      %v1055 = vadd.f32 0.0, %v1054
      %1056 = vmatprep.mubr.f32.mxu0 0.0
      %1057 = vmatmul.mubr.f32.gmra.mrb[0].mxu0 %v984
      %v1058 = vpop.f32.mrb[0].mxu0
      %v1059 = vadd.f32 0.0, %v1058
      %v1060 = vpop.f32.mrb[0].mxu0
      %v1061 = vadd.f32 0.0, %v1060
      %1062 = vdwg.mxu0
      %v1063 = vadd.f32 %v962, %v1053
      %v1064 = vadd.f32 %v963, %v1055
      %v1065 = vadd.f32 %v964, %v1059
      %v1066 = vadd.f32 %v965, %v1061
      %s1067 = scalar_lea.vmem %s1, 144
      %v1068 = vld [vmem:[%s1067] sm:$0xff]
      %v1069 = vld [vmem:[%s1067 + $0x8] sm:$0xff]
      %1070 = vrot.lane.b32.xlu0 %v171, 108
      %v1071 = vpop.permute.xlu0 %1070
      %1072 = vrot.lane.b32.xlu0 %v172, 108
      %v1073 = vpop.permute.xlu0 %1072
      %1074 = vrot.lane.b32.xlu0 %v173, 108
      %v1075 = vpop.permute.xlu0 %1074
      %vm1076 = vcmask 883712
      %v1077 = vsel %vm1076, %v1071, %v1073
      %v1078 = vsel %vm1076, %v1073, %v1075
      %v1082 = vsel %vm193, %v1068, 0
      %v1085 = vsel %vm193, %v1069, 0
      %1087 = vmatprep.subr.mxu0 %v1078
      %1088 = vmatpush1.msra.mxu0 %v1077
      %1089 = vmatprep.subr.mxu0 0.0
      %1090 = vmatpush1.msra.mxu0 0.0
      %1091 = vmatprep.subr.mxu0 0.0
      %1092 = vmatpush1.msra.mxu0 0.0
      %1093 = vmatprep.subr.mxu0 0.0
      %1094 = vmatpush1.msra.mxu0 0.0
      %1095 = vmatprep.subr.mxu0 0.0
      %1096 = vmatpush1.msra.mxu0 0.0
      %1097 = vmatprep.subr.mxu0 0.0
      %1098 = vmatpush1.msra.mxu0 0.0
      %1099 = vmatprep.subr.mxu0 0.0
      %1100 = vmatpush1.msra.mxu0 0.0
      %1101 = vmatprep.subr.mxu0 0.0
      %1102 = vmatpush1.msra.mxu0 0.0
      %1103 = vmatprep.subr.mxu0 0.0
      %1104 = vmatpush1.msra.mxu0 0.0
      %1105 = vmatprep.subr.mxu0 0.0
      %1106 = vmatpush1.msra.mxu0 0.0
      %1107 = vmatprep.subr.mxu0 0.0
      %1108 = vmatpush1.msra.mxu0 0.0
      %1109 = vmatprep.subr.mxu0 0.0
      %1110 = vmatpush1.msra.mxu0 0.0
      %1111 = vmatprep.subr.mxu0 0.0
      %1112 = vmatpush1.msra.mxu0 0.0
      %1113 = vmatprep.subr.mxu0 0.0
      %1114 = vmatpush1.msra.mxu0 0.0
      %1115 = vmatprep.subr.mxu0 0.0
      %1116 = vmatpush1.msra.mxu0 0.0
      %1117 = vmatprep.subr.mxu0 0.0
      %1118 = vmatpush1.msra.mxu0 0.0
      %1119 = vmatprep.subr.mxu0 0.0
      %1120 = vmatpush1.msra.mxu0 0.0
      %1121 = vmatprep.subr.mxu0 0.0
      %1122 = vmatpush1.msra.mxu0 0.0
      %1123 = vmatprep.subr.mxu0 0.0
      %1124 = vmatpush1.msra.mxu0 0.0
      %1125 = vmatprep.subr.mxu0 0.0
      %1126 = vmatpush1.msra.mxu0 0.0
      %1127 = vmatprep.subr.mxu0 0.0
      %1128 = vmatpush1.msra.mxu0 0.0
      %1129 = vmatprep.subr.mxu0 0.0
      %1130 = vmatpush1.msra.mxu0 0.0
      %1131 = vmatprep.subr.mxu0 0.0
      %1132 = vmatpush1.msra.mxu0 0.0
      %1133 = vmatprep.subr.mxu0 0.0
      %1134 = vmatpush1.msra.mxu0 0.0
      %1135 = vmatprep.subr.mxu0 0.0
      %1136 = vmatpush1.msra.mxu0 0.0
      %1137 = vmatprep.subr.mxu0 0.0
      %1138 = vmatpush1.msra.mxu0 0.0
      %1139 = vmatprep.subr.mxu0 0.0
      %1140 = vmatpush1.msra.mxu0 0.0
      %1141 = vmatprep.subr.mxu0 0.0
      %1142 = vmatpush1.msra.mxu0 0.0
      %1143 = vmatprep.subr.mxu0 0.0
      %1144 = vmatpush1.msra.mxu0 0.0
      %1145 = vmatprep.subr.mxu0 0.0
      %1146 = vmatpush1.msra.mxu0 0.0
      %1147 = vmatprep.subr.mxu0 0.0
      %1148 = vmatpush1.msra.mxu0 0.0
      %1149 = vmatprep.subr.mxu0 0.0
      %1150 = vmatpush1.msra.mxu0 0.0
      %1151 = vmatprep.mubr.f32.mxu0 0.0
      %1152 = vmatmul.mubr.f32.gmra.mrb[0].mxu0 %v1082
      %v1153 = vpop.f32.mrb[0].mxu0
      %v1154 = vadd.f32 0.0, %v1153
      %v1155 = vpop.f32.mrb[0].mxu0
      %v1156 = vadd.f32 0.0, %v1155
      %1157 = vmatprep.mubr.f32.mxu0 0.0
      %1158 = vmatmul.mubr.f32.gmra.mrb[0].mxu0 %v1085
      %v1159 = vpop.f32.mrb[0].mxu0
      %v1160 = vadd.f32 0.0, %v1159
      %v1161 = vpop.f32.mrb[0].mxu0
      %v1162 = vadd.f32 0.0, %v1161
      %1163 = vdwg.mxu0
      %v1164 = vadd.f32 %v1063, %v1154
      %v1165 = vadd.f32 %v1064, %v1156
      %v1166 = vadd.f32 %v1065, %v1160
      %v1167 = vadd.f32 %v1066, %v1162
      %s1168 = scalar_lea.vmem %s1, 160
      %v1169 = vld [vmem:[%s1168] sm:$0xff]
      %v1170 = vld [vmem:[%s1168 + $0x8] sm:$0xff]
      %1171 = vrot.lane.b32.xlu0 %v171, 96
      %v1172 = vpop.permute.xlu0 %1171
      %1173 = vrot.lane.b32.xlu0 %v172, 96
      %v1174 = vpop.permute.xlu0 %1173
      %1175 = vrot.lane.b32.xlu0 %v173, 96
      %v1176 = vpop.permute.xlu0 %1175
      %vm1177 = vcmask 785408
      %v1178 = vsel %vm1177, %v1172, %v1174
      %v1179 = vsel %vm1177, %v1174, %v1176
      %v1183 = vsel %vm193, %v1169, 0
      %v1186 = vsel %vm193, %v1170, 0
      %1188 = vmatprep.subr.mxu0 %v1179
      %1189 = vmatpush1.msra.mxu0 %v1178
      %1190 = vmatprep.subr.mxu0 0.0
      %1191 = vmatpush1.msra.mxu0 0.0
      %1192 = vmatprep.subr.mxu0 0.0
      %1193 = vmatpush1.msra.mxu0 0.0
      %1194 = vmatprep.subr.mxu0 0.0
      %1195 = vmatpush1.msra.mxu0 0.0
      %1196 = vmatprep.subr.mxu0 0.0
      %1197 = vmatpush1.msra.mxu0 0.0
      %1198 = vmatprep.subr.mxu0 0.0
      %1199 = vmatpush1.msra.mxu0 0.0
      %1200 = vmatprep.subr.mxu0 0.0
      %1201 = vmatpush1.msra.mxu0 0.0
      %1202 = vmatprep.subr.mxu0 0.0
      %1203 = vmatpush1.msra.mxu0 0.0
      %1204 = vmatprep.subr.mxu0 0.0
      %1205 = vmatpush1.msra.mxu0 0.0
      %1206 = vmatprep.subr.mxu0 0.0
      %1207 = vmatpush1.msra.mxu0 0.0
      %1208 = vmatprep.subr.mxu0 0.0
      %1209 = vmatpush1.msra.mxu0 0.0
      %1210 = vmatprep.subr.mxu0 0.0
      %1211 = vmatpush1.msra.mxu0 0.0
      %1212 = vmatprep.subr.mxu0 0.0
      %1213 = vmatpush1.msra.mxu0 0.0
      %1214 = vmatprep.subr.mxu0 0.0
      %1215 = vmatpush1.msra.mxu0 0.0
      %1216 = vmatprep.subr.mxu0 0.0
      %1217 = vmatpush1.msra.mxu0 0.0
      %1218 = vmatprep.subr.mxu0 0.0
      %1219 = vmatpush1.msra.mxu0 0.0
      %1220 = vmatprep.subr.mxu0 0.0
      %1221 = vmatpush1.msra.mxu0 0.0
      %1222 = vmatprep.subr.mxu0 0.0
      %1223 = vmatpush1.msra.mxu0 0.0
      %1224 = vmatprep.subr.mxu0 0.0
      %1225 = vmatpush1.msra.mxu0 0.0
      %1226 = vmatprep.subr.mxu0 0.0
      %1227 = vmatpush1.msra.mxu0 0.0
      %1228 = vmatprep.subr.mxu0 0.0
      %1229 = vmatpush1.msra.mxu0 0.0
      %1230 = vmatprep.subr.mxu0 0.0
      %1231 = vmatpush1.msra.mxu0 0.0
      %1232 = vmatprep.subr.mxu0 0.0
      %1233 = vmatpush1.msra.mxu0 0.0
      %1234 = vmatprep.subr.mxu0 0.0
      %1235 = vmatpush1.msra.mxu0 0.0
      %1236 = vmatprep.subr.mxu0 0.0
      %1237 = vmatpush1.msra.mxu0 0.0
      %1238 = vmatprep.subr.mxu0 0.0
      %1239 = vmatpush1.msra.mxu0 0.0
      %1240 = vmatprep.subr.mxu0 0.0
      %1241 = vmatpush1.msra.mxu0 0.0
      %1242 = vmatprep.subr.mxu0 0.0
      %1243 = vmatpush1.msra.mxu0 0.0
      %1244 = vmatprep.subr.mxu0 0.0
      %1245 = vmatpush1.msra.mxu0 0.0
      %1246 = vmatprep.subr.mxu0 0.0
      %1247 = vmatpush1.msra.mxu0 0.0
      %1248 = vmatprep.subr.mxu0 0.0
      %1249 = vmatpush1.msra.mxu0 0.0
      %1250 = vmatprep.subr.mxu0 0.0
      %1251 = vmatpush1.msra.mxu0 0.0
      %1252 = vmatprep.mubr.f32.mxu0 0.0
      %1253 = vmatmul.mubr.f32.gmra.mrb[0].mxu0 %v1183
      %v1254 = vpop.f32.mrb[0].mxu0
      %v1255 = vadd.f32 0.0, %v1254
      %v1256 = vpop.f32.mrb[0].mxu0
      %v1257 = vadd.f32 0.0, %v1256
      %1258 = vmatprep.mubr.f32.mxu0 0.0
      %1259 = vmatmul.mubr.f32.gmra.mrb[0].mxu0 %v1186
      %v1260 = vpop.f32.mrb[0].mxu0
      %v1261 = vadd.f32 0.0, %v1260
      %v1262 = vpop.f32.mrb[0].mxu0
      %v1263 = vadd.f32 0.0, %v1262
      %1264 = vdwg.mxu0
      %v1265 = vadd.f32 %v1164, %v1255
      %v1266 = vadd.f32 %v1165, %v1257
      %v1267 = vadd.f32 %v1166, %v1261
      %v1268 = vadd.f32 %v1167, %v1263
      %s1269 = scalar_lea.vmem %s1, 176
      %v1270 = vld [vmem:[%s1269] sm:$0xff]
      %v1271 = vld [vmem:[%s1269 + $0x8] sm:$0xff]
      %1272 = vrot.lane.b32.xlu0 %v171, 95
      %v1273 = vpop.permute.xlu0 %1272
      %1274 = vrot.lane.b32.xlu0 %v172, 95
      %v1275 = vpop.permute.xlu0 %1274
      %1276 = vrot.lane.b32.xlu0 %v173, 95
      %v1277 = vpop.permute.xlu0 %1276
      %vm1278 = vcmask 777216
      %v1279 = vsel %vm1278, %v1273, %v1275
      %v1280 = vsel %vm1278, %v1275, %v1277
      %v1284 = vsel %vm193, %v1270, 0
      %v1287 = vsel %vm193, %v1271, 0
      %1289 = vmatprep.subr.mxu0 %v1280
      %1290 = vmatpush1.msra.mxu0 %v1279
      %1291 = vmatprep.subr.mxu0 0.0
      %1292 = vmatpush1.msra.mxu0 0.0
      %1293 = vmatprep.subr.mxu0 0.0
      %1294 = vmatpush1.msra.mxu0 0.0
      %1295 = vmatprep.subr.mxu0 0.0
      %1296 = vmatpush1.msra.mxu0 0.0
      %1297 = vmatprep.subr.mxu0 0.0
      %1298 = vmatpush1.msra.mxu0 0.0
      %1299 = vmatprep.subr.mxu0 0.0
      %1300 = vmatpush1.msra.mxu0 0.0
      %1301 = vmatprep.subr.mxu0 0.0
      %1302 = vmatpush1.msra.mxu0 0.0
      %1303 = vmatprep.subr.mxu0 0.0
      %1304 = vmatpush1.msra.mxu0 0.0
      %1305 = vmatprep.subr.mxu0 0.0
      %1306 = vmatpush1.msra.mxu0 0.0
      %1307 = vmatprep.subr.mxu0 0.0
      %1308 = vmatpush1.msra.mxu0 0.0
      %1309 = vmatprep.subr.mxu0 0.0
      %1310 = vmatpush1.msra.mxu0 0.0
      %1311 = vmatprep.subr.mxu0 0.0
      %1312 = vmatpush1.msra.mxu0 0.0
      %1313 = vmatprep.subr.mxu0 0.0
      %1314 = vmatpush1.msra.mxu0 0.0
      %1315 = vmatprep.subr.mxu0 0.0
      %1316 = vmatpush1.msra.mxu0 0.0
      %1317 = vmatprep.subr.mxu0 0.0
      %1318 = vmatpush1.msra.mxu0 0.0
      %1319 = vmatprep.subr.mxu0 0.0
      %1320 = vmatpush1.msra.mxu0 0.0
      %1321 = vmatprep.subr.mxu0 0.0
      %1322 = vmatpush1.msra.mxu0 0.0
      %1323 = vmatprep.subr.mxu0 0.0
      %1324 = vmatpush1.msra.mxu0 0.0
      %1325 = vmatprep.subr.mxu0 0.0
      %1326 = vmatpush1.msra.mxu0 0.0
      %1327 = vmatprep.subr.mxu0 0.0
      %1328 = vmatpush1.msra.mxu0 0.0
      %1329 = vmatprep.subr.mxu0 0.0
      %1330 = vmatpush1.msra.mxu0 0.0
      %1331 = vmatprep.subr.mxu0 0.0
      %1332 = vmatpush1.msra.mxu0 0.0
      %1333 = vmatprep.subr.mxu0 0.0
      %1334 = vmatpush1.msra.mxu0 0.0
      %1335 = vmatprep.subr.mxu0 0.0
      %1336 = vmatpush1.msra.mxu0 0.0
      %1337 = vmatprep.subr.mxu0 0.0
      %1338 = vmatpush1.msra.mxu0 0.0
      %1339 = vmatprep.subr.mxu0 0.0
      %1340 = vmatpush1.msra.mxu0 0.0
      %1341 = vmatprep.subr.mxu0 0.0
      %1342 = vmatpush1.msra.mxu0 0.0
      %1343 = vmatprep.subr.mxu0 0.0
      %1344 = vmatpush1.msra.mxu0 0.0
      %1345 = vmatprep.subr.mxu0 0.0
      %1346 = vmatpush1.msra.mxu0 0.0
      %1347 = vmatprep.subr.mxu0 0.0
      %1348 = vmatpush1.msra.mxu0 0.0
      %1349 = vmatprep.subr.mxu0 0.0
      %1350 = vmatpush1.msra.mxu0 0.0
      %1351 = vmatprep.subr.mxu0 0.0
      %1352 = vmatpush1.msra.mxu0 0.0
      %1353 = vmatprep.mubr.f32.mxu0 0.0
      %1354 = vmatmul.mubr.f32.gmra.mrb[0].mxu0 %v1284
      %v1355 = vpop.f32.mrb[0].mxu0
      %v1356 = vadd.f32 0.0, %v1355
      %v1357 = vpop.f32.mrb[0].mxu0
      %v1358 = vadd.f32 0.0, %v1357
      %1359 = vmatprep.mubr.f32.mxu0 0.0
      %1360 = vmatmul.mubr.f32.gmra.mrb[0].mxu0 %v1287
      %v1361 = vpop.f32.mrb[0].mxu0
      %v1362 = vadd.f32 0.0, %v1361
      %v1363 = vpop.f32.mrb[0].mxu0
      %v1364 = vadd.f32 0.0, %v1363
      %1365 = vdwg.mxu0
      %v1366 = vadd.f32 %v1265, %v1356
      %v1367 = vadd.f32 %v1266, %v1358
      %v1368 = vadd.f32 %v1267, %v1362
      %v1369 = vadd.f32 %v1268, %v1364
      %s1370 = scalar_lea.vmem %s1, 192
      %v1371 = vld [vmem:[%s1370] sm:$0xff]
      %v1372 = vld [vmem:[%s1370 + $0x8] sm:$0xff]
      %1373 = vrot.lane.b32.xlu0 %v171, 94
      %v1374 = vpop.permute.xlu0 %1373
      %1375 = vrot.lane.b32.xlu0 %v172, 94
      %v1376 = vpop.permute.xlu0 %1375
      %1377 = vrot.lane.b32.xlu0 %v173, 94
      %v1378 = vpop.permute.xlu0 %1377
      %vm1379 = vcmask 769024
      %v1380 = vsel %vm1379, %v1374, %v1376
      %v1381 = vsel %vm1379, %v1376, %v1378
      %v1385 = vsel %vm193, %v1371, 0
      %v1388 = vsel %vm193, %v1372, 0
      %1390 = vmatprep.subr.mxu0 %v1381
      %1391 = vmatpush1.msra.mxu0 %v1380
      %1392 = vmatprep.subr.mxu0 0.0
      %1393 = vmatpush1.msra.mxu0 0.0
      %1394 = vmatprep.subr.mxu0 0.0
      %1395 = vmatpush1.msra.mxu0 0.0
      %1396 = vmatprep.subr.mxu0 0.0
      %1397 = vmatpush1.msra.mxu0 0.0
      %1398 = vmatprep.subr.mxu0 0.0
      %1399 = vmatpush1.msra.mxu0 0.0
      %1400 = vmatprep.subr.mxu0 0.0
      %1401 = vmatpush1.msra.mxu0 0.0
      %1402 = vmatprep.subr.mxu0 0.0
      %1403 = vmatpush1.msra.mxu0 0.0
      %1404 = vmatprep.subr.mxu0 0.0
      %1405 = vmatpush1.msra.mxu0 0.0
      %1406 = vmatprep.subr.mxu0 0.0
      %1407 = vmatpush1.msra.mxu0 0.0
      %1408 = vmatprep.subr.mxu0 0.0
      %1409 = vmatpush1.msra.mxu0 0.0
      %1410 = vmatprep.subr.mxu0 0.0
      %1411 = vmatpush1.msra.mxu0 0.0
      %1412 = vmatprep.subr.mxu0 0.0
      %1413 = vmatpush1.msra.mxu0 0.0
      %1414 = vmatprep.subr.mxu0 0.0
      %1415 = vmatpush1.msra.mxu0 0.0
      %1416 = vmatprep.subr.mxu0 0.0
      %1417 = vmatpush1.msra.mxu0 0.0
      %1418 = vmatprep.subr.mxu0 0.0
      %1419 = vmatpush1.msra.mxu0 0.0
      %1420 = vmatprep.subr.mxu0 0.0
      %1421 = vmatpush1.msra.mxu0 0.0
      %1422 = vmatprep.subr.mxu0 0.0
      %1423 = vmatpush1.msra.mxu0 0.0
      %1424 = vmatprep.subr.mxu0 0.0
      %1425 = vmatpush1.msra.mxu0 0.0
      %1426 = vmatprep.subr.mxu0 0.0
      %1427 = vmatpush1.msra.mxu0 0.0
      %1428 = vmatprep.subr.mxu0 0.0
      %1429 = vmatpush1.msra.mxu0 0.0
      %1430 = vmatprep.subr.mxu0 0.0
      %1431 = vmatpush1.msra.mxu0 0.0
      %1432 = vmatprep.subr.mxu0 0.0
      %1433 = vmatpush1.msra.mxu0 0.0
      %1434 = vmatprep.subr.mxu0 0.0
      %1435 = vmatpush1.msra.mxu0 0.0
      %1436 = vmatprep.subr.mxu0 0.0
      %1437 = vmatpush1.msra.mxu0 0.0
      %1438 = vmatprep.subr.mxu0 0.0
      %1439 = vmatpush1.msra.mxu0 0.0
      %1440 = vmatprep.subr.mxu0 0.0
      %1441 = vmatpush1.msra.mxu0 0.0
      %1442 = vmatprep.subr.mxu0 0.0
      %1443 = vmatpush1.msra.mxu0 0.0
      %1444 = vmatprep.subr.mxu0 0.0
      %1445 = vmatpush1.msra.mxu0 0.0
      %1446 = vmatprep.subr.mxu0 0.0
      %1447 = vmatpush1.msra.mxu0 0.0
      %1448 = vmatprep.subr.mxu0 0.0
      %1449 = vmatpush1.msra.mxu0 0.0
      %1450 = vmatprep.subr.mxu0 0.0
      %1451 = vmatpush1.msra.mxu0 0.0
      %1452 = vmatprep.subr.mxu0 0.0
      %1453 = vmatpush1.msra.mxu0 0.0
      %1454 = vmatprep.mubr.f32.mxu0 0.0
      %1455 = vmatmul.mubr.f32.gmra.mrb[0].mxu0 %v1385
      %v1456 = vpop.f32.mrb[0].mxu0
      %v1457 = vadd.f32 0.0, %v1456
      %v1458 = vpop.f32.mrb[0].mxu0
      %v1459 = vadd.f32 0.0, %v1458
      %1460 = vmatprep.mubr.f32.mxu0 0.0
      %1461 = vmatmul.mubr.f32.gmra.mrb[0].mxu0 %v1388
      %v1462 = vpop.f32.mrb[0].mxu0
      %v1463 = vadd.f32 0.0, %v1462
      %v1464 = vpop.f32.mrb[0].mxu0
      %v1465 = vadd.f32 0.0, %v1464
      %1466 = vdwg.mxu0
      %v1467 = vadd.f32 %v1366, %v1457
      %v1468 = vadd.f32 %v1367, %v1459
      %v1469 = vadd.f32 %v1368, %v1463
      %v1470 = vadd.f32 %v1369, %v1465
      %s1471 = scalar_lea.vmem %s1, 208
      %v1472 = vld [vmem:[%s1471] sm:$0xff]
      %v1473 = vld [vmem:[%s1471 + $0x8] sm:$0xff]
      %1474 = vrot.lane.b32.xlu0 %v171, 93
      %v1475 = vpop.permute.xlu0 %1474
      %1476 = vrot.lane.b32.xlu0 %v172, 93
      %v1477 = vpop.permute.xlu0 %1476
      %1478 = vrot.lane.b32.xlu0 %v173, 93
      %v1479 = vpop.permute.xlu0 %1478
      %vm1480 = vcmask 760832
      %v1481 = vsel %vm1480, %v1475, %v1477
      %v1482 = vsel %vm1480, %v1477, %v1479
      %v1486 = vsel %vm193, %v1472, 0
      %v1489 = vsel %vm193, %v1473, 0
      %1491 = vmatprep.subr.mxu0 %v1482
      %1492 = vmatpush1.msra.mxu0 %v1481
      %1493 = vmatprep.subr.mxu0 0.0
      %1494 = vmatpush1.msra.mxu0 0.0
      %1495 = vmatprep.subr.mxu0 0.0
      %1496 = vmatpush1.msra.mxu0 0.0
      %1497 = vmatprep.subr.mxu0 0.0
      %1498 = vmatpush1.msra.mxu0 0.0
      %1499 = vmatprep.subr.mxu0 0.0
      %1500 = vmatpush1.msra.mxu0 0.0
      %1501 = vmatprep.subr.mxu0 0.0
      %1502 = vmatpush1.msra.mxu0 0.0
      %1503 = vmatprep.subr.mxu0 0.0
      %1504 = vmatpush1.msra.mxu0 0.0
      %1505 = vmatprep.subr.mxu0 0.0
      %1506 = vmatpush1.msra.mxu0 0.0
      %1507 = vmatprep.subr.mxu0 0.0
      %1508 = vmatpush1.msra.mxu0 0.0
      %1509 = vmatprep.subr.mxu0 0.0
      %1510 = vmatpush1.msra.mxu0 0.0
      %1511 = vmatprep.subr.mxu0 0.0
      %1512 = vmatpush1.msra.mxu0 0.0
      %1513 = vmatprep.subr.mxu0 0.0
      %1514 = vmatpush1.msra.mxu0 0.0
      %1515 = vmatprep.subr.mxu0 0.0
      %1516 = vmatpush1.msra.mxu0 0.0
      %1517 = vmatprep.subr.mxu0 0.0
      %1518 = vmatpush1.msra.mxu0 0.0
      %1519 = vmatprep.subr.mxu0 0.0
      %1520 = vmatpush1.msra.mxu0 0.0
      %1521 = vmatprep.subr.mxu0 0.0
      %1522 = vmatpush1.msra.mxu0 0.0
      %1523 = vmatprep.subr.mxu0 0.0
      %1524 = vmatpush1.msra.mxu0 0.0
      %1525 = vmatprep.subr.mxu0 0.0
      %1526 = vmatpush1.msra.mxu0 0.0
      %1527 = vmatprep.subr.mxu0 0.0
      %1528 = vmatpush1.msra.mxu0 0.0
      %1529 = vmatprep.subr.mxu0 0.0
      %1530 = vmatpush1.msra.mxu0 0.0
      %1531 = vmatprep.subr.mxu0 0.0
      %1532 = vmatpush1.msra.mxu0 0.0
      %1533 = vmatprep.subr.mxu0 0.0
      %1534 = vmatpush1.msra.mxu0 0.0
      %1535 = vmatprep.subr.mxu0 0.0
      %1536 = vmatpush1.msra.mxu0 0.0
      %1537 = vmatprep.subr.mxu0 0.0
      %1538 = vmatpush1.msra.mxu0 0.0
      %1539 = vmatprep.subr.mxu0 0.0
      %1540 = vmatpush1.msra.mxu0 0.0
      %1541 = vmatprep.subr.mxu0 0.0
      %1542 = vmatpush1.msra.mxu0 0.0
      %1543 = vmatprep.subr.mxu0 0.0
      %1544 = vmatpush1.msra.mxu0 0.0
      %1545 = vmatprep.subr.mxu0 0.0
      %1546 = vmatpush1.msra.mxu0 0.0
      %1547 = vmatprep.subr.mxu0 0.0
      %1548 = vmatpush1.msra.mxu0 0.0
      %1549 = vmatprep.subr.mxu0 0.0
      %1550 = vmatpush1.msra.mxu0 0.0
      %1551 = vmatprep.subr.mxu0 0.0
      %1552 = vmatpush1.msra.mxu0 0.0
      %1553 = vmatprep.subr.mxu0 0.0
      %1554 = vmatpush1.msra.mxu0 0.0
      %1555 = vmatprep.mubr.f32.mxu0 0.0
      %1556 = vmatmul.mubr.f32.gmra.mrb[0].mxu0 %v1486
      %v1557 = vpop.f32.mrb[0].mxu0
      %v1558 = vadd.f32 0.0, %v1557
      %v1559 = vpop.f32.mrb[0].mxu0
      %v1560 = vadd.f32 0.0, %v1559
      %1561 = vmatprep.mubr.f32.mxu0 0.0
      %1562 = vmatmul.mubr.f32.gmra.mrb[0].mxu0 %v1489
      %v1563 = vpop.f32.mrb[0].mxu0
      %v1564 = vadd.f32 0.0, %v1563
      %v1565 = vpop.f32.mrb[0].mxu0
      %v1566 = vadd.f32 0.0, %v1565
      %1567 = vdwg.mxu0
      %v1568 = vadd.f32 %v1467, %v1558
      %v1569 = vadd.f32 %v1468, %v1560
      %v1570 = vadd.f32 %v1469, %v1564
      %v1571 = vadd.f32 %v1470, %v1566
      %s1572 = scalar_lea.vmem %s1, 224
      %v1573 = vld [vmem:[%s1572] sm:$0xff]
      %v1574 = vld [vmem:[%s1572 + $0x8] sm:$0xff]
      %1575 = vrot.lane.b32.xlu0 %v171, 92
      %v1576 = vpop.permute.xlu0 %1575
      %1577 = vrot.lane.b32.xlu0 %v172, 92
      %v1578 = vpop.permute.xlu0 %1577
      %1579 = vrot.lane.b32.xlu0 %v173, 92
      %v1580 = vpop.permute.xlu0 %1579
      %vm1581 = vcmask 752640
      %v1582 = vsel %vm1581, %v1576, %v1578
      %v1583 = vsel %vm1581, %v1578, %v1580
      %v1587 = vsel %vm193, %v1573, 0
      %v1590 = vsel %vm193, %v1574, 0
      %1592 = vmatprep.subr.mxu0 %v1583
      %1593 = vmatpush1.msra.mxu0 %v1582
      %1594 = vmatprep.subr.mxu0 0.0
      %1595 = vmatpush1.msra.mxu0 0.0
      %1596 = vmatprep.subr.mxu0 0.0
      %1597 = vmatpush1.msra.mxu0 0.0
      %1598 = vmatprep.subr.mxu0 0.0
      %1599 = vmatpush1.msra.mxu0 0.0
      %1600 = vmatprep.subr.mxu0 0.0
      %1601 = vmatpush1.msra.mxu0 0.0
      %1602 = vmatprep.subr.mxu0 0.0
      %1603 = vmatpush1.msra.mxu0 0.0
      %1604 = vmatprep.subr.mxu0 0.0
      %1605 = vmatpush1.msra.mxu0 0.0
      %1606 = vmatprep.subr.mxu0 0.0
      %1607 = vmatpush1.msra.mxu0 0.0
      %1608 = vmatprep.subr.mxu0 0.0
      %1609 = vmatpush1.msra.mxu0 0.0
      %1610 = vmatprep.subr.mxu0 0.0
      %1611 = vmatpush1.msra.mxu0 0.0
      %1612 = vmatprep.subr.mxu0 0.0
      %1613 = vmatpush1.msra.mxu0 0.0
      %1614 = vmatprep.subr.mxu0 0.0
      %1615 = vmatpush1.msra.mxu0 0.0
      %1616 = vmatprep.subr.mxu0 0.0
      %1617 = vmatpush1.msra.mxu0 0.0
      %1618 = vmatprep.subr.mxu0 0.0
      %1619 = vmatpush1.msra.mxu0 0.0
      %1620 = vmatprep.subr.mxu0 0.0
      %1621 = vmatpush1.msra.mxu0 0.0
      %1622 = vmatprep.subr.mxu0 0.0
      %1623 = vmatpush1.msra.mxu0 0.0
      %1624 = vmatprep.subr.mxu0 0.0
      %1625 = vmatpush1.msra.mxu0 0.0
      %1626 = vmatprep.subr.mxu0 0.0
      %1627 = vmatpush1.msra.mxu0 0.0
      %1628 = vmatprep.subr.mxu0 0.0
      %1629 = vmatpush1.msra.mxu0 0.0
      %1630 = vmatprep.subr.mxu0 0.0
      %1631 = vmatpush1.msra.mxu0 0.0
      %1632 = vmatprep.subr.mxu0 0.0
      %1633 = vmatpush1.msra.mxu0 0.0
      %1634 = vmatprep.subr.mxu0 0.0
      %1635 = vmatpush1.msra.mxu0 0.0
      %1636 = vmatprep.subr.mxu0 0.0
      %1637 = vmatpush1.msra.mxu0 0.0
      %1638 = vmatprep.subr.mxu0 0.0
      %1639 = vmatpush1.msra.mxu0 0.0
      %1640 = vmatprep.subr.mxu0 0.0
      %1641 = vmatpush1.msra.mxu0 0.0
      %1642 = vmatprep.subr.mxu0 0.0
      %1643 = vmatpush1.msra.mxu0 0.0
      %1644 = vmatprep.subr.mxu0 0.0
      %1645 = vmatpush1.msra.mxu0 0.0
      %1646 = vmatprep.subr.mxu0 0.0
      %1647 = vmatpush1.msra.mxu0 0.0
      %1648 = vmatprep.subr.mxu0 0.0
      %1649 = vmatpush1.msra.mxu0 0.0
      %1650 = vmatprep.subr.mxu0 0.0
      %1651 = vmatpush1.msra.mxu0 0.0
      %1652 = vmatprep.subr.mxu0 0.0
      %1653 = vmatpush1.msra.mxu0 0.0
      %1654 = vmatprep.subr.mxu0 0.0
      %1655 = vmatpush1.msra.mxu0 0.0
      %1656 = vmatprep.mubr.f32.mxu0 0.0
      %1657 = vmatmul.mubr.f32.gmra.mrb[0].mxu0 %v1587
      %v1658 = vpop.f32.mrb[0].mxu0
      %v1659 = vadd.f32 0.0, %v1658
      %v1660 = vpop.f32.mrb[0].mxu0
      %v1661 = vadd.f32 0.0, %v1660
      %1662 = vmatprep.mubr.f32.mxu0 0.0
      %1663 = vmatmul.mubr.f32.gmra.mrb[0].mxu0 %v1590
      %v1664 = vpop.f32.mrb[0].mxu0
      %v1665 = vadd.f32 0.0, %v1664
      %v1666 = vpop.f32.mrb[0].mxu0
      %v1667 = vadd.f32 0.0, %v1666
      %1668 = vdwg.mxu0
      %v1669 = vadd.f32 %v1568, %v1659
      %v1670 = vadd.f32 %v1569, %v1661
      %v1671 = vadd.f32 %v1570, %v1665
      %v1672 = vadd.f32 %v1571, %v1667
      %s1673 = scalar_lea.vmem %s1, 240
      %v1674 = vld [vmem:[%s1673] sm:$0xff]
      %v1675 = vld [vmem:[%s1673 + $0x8] sm:$0xff]
      %1676 = vrot.lane.b32.xlu0 %v171, 80
      %v1677 = vpop.permute.xlu0 %1676
      %1678 = vrot.lane.b32.xlu0 %v172, 80
      %v1679 = vpop.permute.xlu0 %1678
      %1680 = vrot.lane.b32.xlu0 %v173, 80
      %v1681 = vpop.permute.xlu0 %1680
      %vm1682 = vcmask 654336
      %v1683 = vsel %vm1682, %v1677, %v1679
      %v1684 = vsel %vm1682, %v1679, %v1681
      %v1688 = vsel %vm193, %v1674, 0
      %v1691 = vsel %vm193, %v1675, 0
      %1693 = vmatprep.subr.mxu0 %v1684
      %1694 = vmatpush1.msra.mxu0 %v1683
      %1695 = vmatprep.subr.mxu0 0.0
      %1696 = vmatpush1.msra.mxu0 0.0
      %1697 = vmatprep.subr.mxu0 0.0
      %1698 = vmatpush1.msra.mxu0 0.0
      %1699 = vmatprep.subr.mxu0 0.0
      %1700 = vmatpush1.msra.mxu0 0.0
      %1701 = vmatprep.subr.mxu0 0.0
      %1702 = vmatpush1.msra.mxu0 0.0
      %1703 = vmatprep.subr.mxu0 0.0
      %1704 = vmatpush1.msra.mxu0 0.0
      %1705 = vmatprep.subr.mxu0 0.0
      %1706 = vmatpush1.msra.mxu0 0.0
      %1707 = vmatprep.subr.mxu0 0.0
      %1708 = vmatpush1.msra.mxu0 0.0
      %1709 = vmatprep.subr.mxu0 0.0
      %1710 = vmatpush1.msra.mxu0 0.0
      %1711 = vmatprep.subr.mxu0 0.0
      %1712 = vmatpush1.msra.mxu0 0.0
      %1713 = vmatprep.subr.mxu0 0.0
      %1714 = vmatpush1.msra.mxu0 0.0
      %1715 = vmatprep.subr.mxu0 0.0
      %1716 = vmatpush1.msra.mxu0 0.0
      %1717 = vmatprep.subr.mxu0 0.0
      %1718 = vmatpush1.msra.mxu0 0.0
      %1719 = vmatprep.subr.mxu0 0.0
      %1720 = vmatpush1.msra.mxu0 0.0
      %1721 = vmatprep.subr.mxu0 0.0
      %1722 = vmatpush1.msra.mxu0 0.0
      %1723 = vmatprep.subr.mxu0 0.0
      %1724 = vmatpush1.msra.mxu0 0.0
      %1725 = vmatprep.subr.mxu0 0.0
      %1726 = vmatpush1.msra.mxu0 0.0
      %1727 = vmatprep.subr.mxu0 0.0
      %1728 = vmatpush1.msra.mxu0 0.0
      %1729 = vmatprep.subr.mxu0 0.0
      %1730 = vmatpush1.msra.mxu0 0.0
      %1731 = vmatprep.subr.mxu0 0.0
      %1732 = vmatpush1.msra.mxu0 0.0
      %1733 = vmatprep.subr.mxu0 0.0
      %1734 = vmatpush1.msra.mxu0 0.0
      %1735 = vmatprep.subr.mxu0 0.0
      %1736 = vmatpush1.msra.mxu0 0.0
      %1737 = vmatprep.subr.mxu0 0.0
      %1738 = vmatpush1.msra.mxu0 0.0
      %1739 = vmatprep.subr.mxu0 0.0
      %1740 = vmatpush1.msra.mxu0 0.0
      %1741 = vmatprep.subr.mxu0 0.0
      %1742 = vmatpush1.msra.mxu0 0.0
      %1743 = vmatprep.subr.mxu0 0.0
      %1744 = vmatpush1.msra.mxu0 0.0
      %1745 = vmatprep.subr.mxu0 0.0
      %1746 = vmatpush1.msra.mxu0 0.0
      %1747 = vmatprep.subr.mxu0 0.0
      %1748 = vmatpush1.msra.mxu0 0.0
      %1749 = vmatprep.subr.mxu0 0.0
      %1750 = vmatpush1.msra.mxu0 0.0
      %1751 = vmatprep.subr.mxu0 0.0
      %1752 = vmatpush1.msra.mxu0 0.0
      %1753 = vmatprep.subr.mxu0 0.0
      %1754 = vmatpush1.msra.mxu0 0.0
      %1755 = vmatprep.subr.mxu0 0.0
      %1756 = vmatpush1.msra.mxu0 0.0
      %1757 = vmatprep.mubr.f32.mxu0 0.0
      %1758 = vmatmul.mubr.f32.gmra.mrb[0].mxu0 %v1688
      %v1759 = vpop.f32.mrb[0].mxu0
      %v1760 = vadd.f32 0.0, %v1759
      %v1761 = vpop.f32.mrb[0].mxu0
      %v1762 = vadd.f32 0.0, %v1761
      %1763 = vmatprep.mubr.f32.mxu0 0.0
      %1764 = vmatmul.mubr.f32.gmra.mrb[0].mxu0 %v1691
      %v1765 = vpop.f32.mrb[0].mxu0
      %v1766 = vadd.f32 0.0, %v1765
      %v1767 = vpop.f32.mrb[0].mxu0
      %v1768 = vadd.f32 0.0, %v1767
      %1769 = vdwg.mxu0
      %v1770 = vadd.f32 %v1669, %v1760
      %v1771 = vadd.f32 %v1670, %v1762
      %v1772 = vadd.f32 %v1671, %v1766
      %v1773 = vadd.f32 %v1672, %v1768
      %s1774 = scalar_lea.vmem %s1, 256
      %v1775 = vld [vmem:[%s1774] sm:$0xff]
      %v1776 = vld [vmem:[%s1774 + $0x8] sm:$0xff]
      %1777 = vrot.lane.b32.xlu0 %v171, 79
      %v1778 = vpop.permute.xlu0 %1777
      %1779 = vrot.lane.b32.xlu0 %v172, 79
      %v1780 = vpop.permute.xlu0 %1779
      %1781 = vrot.lane.b32.xlu0 %v173, 79
      %v1782 = vpop.permute.xlu0 %1781
      %vm1783 = vcmask 646144
      %v1784 = vsel %vm1783, %v1778, %v1780
      %v1785 = vsel %vm1783, %v1780, %v1782
      %v1789 = vsel %vm193, %v1775, 0
      %v1792 = vsel %vm193, %v1776, 0
      %1794 = vmatprep.subr.mxu0 %v1785
      %1795 = vmatpush1.msra.mxu0 %v1784
      %1796 = vmatprep.subr.mxu0 0.0
      %1797 = vmatpush1.msra.mxu0 0.0
      %1798 = vmatprep.subr.mxu0 0.0
      %1799 = vmatpush1.msra.mxu0 0.0
      %1800 = vmatprep.subr.mxu0 0.0
      %1801 = vmatpush1.msra.mxu0 0.0
      %1802 = vmatprep.subr.mxu0 0.0
      %1803 = vmatpush1.msra.mxu0 0.0
      %1804 = vmatprep.subr.mxu0 0.0
      %1805 = vmatpush1.msra.mxu0 0.0
      %1806 = vmatprep.subr.mxu0 0.0
      %1807 = vmatpush1.msra.mxu0 0.0
      %1808 = vmatprep.subr.mxu0 0.0
      %1809 = vmatpush1.msra.mxu0 0.0
      %1810 = vmatprep.subr.mxu0 0.0
      %1811 = vmatpush1.msra.mxu0 0.0
      %1812 = vmatprep.subr.mxu0 0.0
      %1813 = vmatpush1.msra.mxu0 0.0
      %1814 = vmatprep.subr.mxu0 0.0
      %1815 = vmatpush1.msra.mxu0 0.0
      %1816 = vmatprep.subr.mxu0 0.0
      %1817 = vmatpush1.msra.mxu0 0.0
      %1818 = vmatprep.subr.mxu0 0.0
      %1819 = vmatpush1.msra.mxu0 0.0
      %1820 = vmatprep.subr.mxu0 0.0
      %1821 = vmatpush1.msra.mxu0 0.0
      %1822 = vmatprep.subr.mxu0 0.0
      %1823 = vmatpush1.msra.mxu0 0.0
      %1824 = vmatprep.subr.mxu0 0.0
      %1825 = vmatpush1.msra.mxu0 0.0
      %1826 = vmatprep.subr.mxu0 0.0
      %1827 = vmatpush1.msra.mxu0 0.0
      %1828 = vmatprep.subr.mxu0 0.0
      %1829 = vmatpush1.msra.mxu0 0.0
      %1830 = vmatprep.subr.mxu0 0.0
      %1831 = vmatpush1.msra.mxu0 0.0
      %1832 = vmatprep.subr.mxu0 0.0
      %1833 = vmatpush1.msra.mxu0 0.0
      %1834 = vmatprep.subr.mxu0 0.0
      %1835 = vmatpush1.msra.mxu0 0.0
      %1836 = vmatprep.subr.mxu0 0.0
      %1837 = vmatpush1.msra.mxu0 0.0
      %1838 = vmatprep.subr.mxu0 0.0
      %1839 = vmatpush1.msra.mxu0 0.0
      %1840 = vmatprep.subr.mxu0 0.0
      %1841 = vmatpush1.msra.mxu0 0.0
      %1842 = vmatprep.subr.mxu0 0.0
      %1843 = vmatpush1.msra.mxu0 0.0
      %1844 = vmatprep.subr.mxu0 0.0
      %1845 = vmatpush1.msra.mxu0 0.0
      %1846 = vmatprep.subr.mxu0 0.0
      %1847 = vmatpush1.msra.mxu0 0.0
      %1848 = vmatprep.subr.mxu0 0.0
      %1849 = vmatpush1.msra.mxu0 0.0
      %1850 = vmatprep.subr.mxu0 0.0
      %1851 = vmatpush1.msra.mxu0 0.0
      %1852 = vmatprep.subr.mxu0 0.0
      %1853 = vmatpush1.msra.mxu0 0.0
      %1854 = vmatprep.subr.mxu0 0.0
      %1855 = vmatpush1.msra.mxu0 0.0
      %1856 = vmatprep.subr.mxu0 0.0
      %1857 = vmatpush1.msra.mxu0 0.0
      %1858 = vmatprep.mubr.f32.mxu0 0.0
      %1859 = vmatmul.mubr.f32.gmra.mrb[0].mxu0 %v1789
      %v1860 = vpop.f32.mrb[0].mxu0
      %v1861 = vadd.f32 0.0, %v1860
      %v1862 = vpop.f32.mrb[0].mxu0
      %v1863 = vadd.f32 0.0, %v1862
      %1864 = vmatprep.mubr.f32.mxu0 0.0
      %1865 = vmatmul.mubr.f32.gmra.mrb[0].mxu0 %v1792
      %v1866 = vpop.f32.mrb[0].mxu0
      %v1867 = vadd.f32 0.0, %v1866
      %v1868 = vpop.f32.mrb[0].mxu0
      %v1869 = vadd.f32 0.0, %v1868
      %1870 = vdwg.mxu0
      %v1871 = vadd.f32 %v1770, %v1861
      %v1872 = vadd.f32 %v1771, %v1863
      %v1873 = vadd.f32 %v1772, %v1867
      %v1874 = vadd.f32 %v1773, %v1869
      %s1875 = scalar_lea.vmem %s1, 272
      %v1876 = vld [vmem:[%s1875] sm:$0xff]
      %v1877 = vld [vmem:[%s1875 + $0x8] sm:$0xff]
      %1878 = vrot.lane.b32.xlu0 %v171, 78
      %v1879 = vpop.permute.xlu0 %1878
      %1880 = vrot.lane.b32.xlu0 %v172, 78
      %v1881 = vpop.permute.xlu0 %1880
      %1882 = vrot.lane.b32.xlu0 %v173, 78
      %v1883 = vpop.permute.xlu0 %1882
      %vm1884 = vcmask 637952
      %v1885 = vsel %vm1884, %v1879, %v1881
      %v1886 = vsel %vm1884, %v1881, %v1883
      %v1890 = vsel %vm193, %v1876, 0
      %v1893 = vsel %vm193, %v1877, 0
      %1895 = vmatprep.subr.mxu0 %v1886
      %1896 = vmatpush1.msra.mxu0 %v1885
      %1897 = vmatprep.subr.mxu0 0.0
      %1898 = vmatpush1.msra.mxu0 0.0
      %1899 = vmatprep.subr.mxu0 0.0
      %1900 = vmatpush1.msra.mxu0 0.0
      %1901 = vmatprep.subr.mxu0 0.0
      %1902 = vmatpush1.msra.mxu0 0.0
      %1903 = vmatprep.subr.mxu0 0.0
      %1904 = vmatpush1.msra.mxu0 0.0
      %1905 = vmatprep.subr.mxu0 0.0
      %1906 = vmatpush1.msra.mxu0 0.0
      %1907 = vmatprep.subr.mxu0 0.0
      %1908 = vmatpush1.msra.mxu0 0.0
      %1909 = vmatprep.subr.mxu0 0.0
      %1910 = vmatpush1.msra.mxu0 0.0
      %1911 = vmatprep.subr.mxu0 0.0
      %1912 = vmatpush1.msra.mxu0 0.0
      %1913 = vmatprep.subr.mxu0 0.0
      %1914 = vmatpush1.msra.mxu0 0.0
      %1915 = vmatprep.subr.mxu0 0.0
      %1916 = vmatpush1.msra.mxu0 0.0
      %1917 = vmatprep.subr.mxu0 0.0
      %1918 = vmatpush1.msra.mxu0 0.0
      %1919 = vmatprep.subr.mxu0 0.0
      %1920 = vmatpush1.msra.mxu0 0.0
      %1921 = vmatprep.subr.mxu0 0.0
      %1922 = vmatpush1.msra.mxu0 0.0
      %1923 = vmatprep.subr.mxu0 0.0
      %1924 = vmatpush1.msra.mxu0 0.0
      %1925 = vmatprep.subr.mxu0 0.0
      %1926 = vmatpush1.msra.mxu0 0.0
      %1927 = vmatprep.subr.mxu0 0.0
      %1928 = vmatpush1.msra.mxu0 0.0
      %1929 = vmatprep.subr.mxu0 0.0
      %1930 = vmatpush1.msra.mxu0 0.0
      %1931 = vmatprep.subr.mxu0 0.0
      %1932 = vmatpush1.msra.mxu0 0.0
      %1933 = vmatprep.subr.mxu0 0.0
      %1934 = vmatpush1.msra.mxu0 0.0
      %1935 = vmatprep.subr.mxu0 0.0
      %1936 = vmatpush1.msra.mxu0 0.0
      %1937 = vmatprep.subr.mxu0 0.0
      %1938 = vmatpush1.msra.mxu0 0.0
      %1939 = vmatprep.subr.mxu0 0.0
      %1940 = vmatpush1.msra.mxu0 0.0
      %1941 = vmatprep.subr.mxu0 0.0
      %1942 = vmatpush1.msra.mxu0 0.0
      %1943 = vmatprep.subr.mxu0 0.0
      %1944 = vmatpush1.msra.mxu0 0.0
      %1945 = vmatprep.subr.mxu0 0.0
      %1946 = vmatpush1.msra.mxu0 0.0
      %1947 = vmatprep.subr.mxu0 0.0
      %1948 = vmatpush1.msra.mxu0 0.0
      %1949 = vmatprep.subr.mxu0 0.0
      %1950 = vmatpush1.msra.mxu0 0.0
      %1951 = vmatprep.subr.mxu0 0.0
      %1952 = vmatpush1.msra.mxu0 0.0
      %1953 = vmatprep.subr.mxu0 0.0
      %1954 = vmatpush1.msra.mxu0 0.0
      %1955 = vmatprep.subr.mxu0 0.0
      %1956 = vmatpush1.msra.mxu0 0.0
      %1957 = vmatprep.subr.mxu0 0.0
      %1958 = vmatpush1.msra.mxu0 0.0
      %1959 = vmatprep.mubr.f32.mxu0 0.0
      %1960 = vmatmul.mubr.f32.gmra.mrb[0].mxu0 %v1890
      %v1961 = vpop.f32.mrb[0].mxu0
      %v1962 = vadd.f32 0.0, %v1961
      %v1963 = vpop.f32.mrb[0].mxu0
      %v1964 = vadd.f32 0.0, %v1963
      %1965 = vmatprep.mubr.f32.mxu0 0.0
      %1966 = vmatmul.mubr.f32.gmra.mrb[0].mxu0 %v1893
      %v1967 = vpop.f32.mrb[0].mxu0
      %v1968 = vadd.f32 0.0, %v1967
      %v1969 = vpop.f32.mrb[0].mxu0
      %v1970 = vadd.f32 0.0, %v1969
      %1971 = vdwg.mxu0
      %v1972 = vadd.f32 %v1871, %v1962
      %v1973 = vadd.f32 %v1872, %v1964
      %v1974 = vadd.f32 %v1873, %v1968
      %v1975 = vadd.f32 %v1874, %v1970
      %s1976 = scalar_lea.vmem %s1, 288
      %v1977 = vld [vmem:[%s1976] sm:$0xff]
      %v1978 = vld [vmem:[%s1976 + $0x8] sm:$0xff]
      %1979 = vrot.lane.b32.xlu0 %v171, 77
      %v1980 = vpop.permute.xlu0 %1979
      %1981 = vrot.lane.b32.xlu0 %v172, 77
      %v1982 = vpop.permute.xlu0 %1981
      %1983 = vrot.lane.b32.xlu0 %v173, 77
      %v1984 = vpop.permute.xlu0 %1983
      %vm1985 = vcmask 629760
      %v1986 = vsel %vm1985, %v1980, %v1982
      %v1987 = vsel %vm1985, %v1982, %v1984
      %v1991 = vsel %vm193, %v1977, 0
      %v1994 = vsel %vm193, %v1978, 0
      %1996 = vmatprep.subr.mxu0 %v1987
      %1997 = vmatpush1.msra.mxu0 %v1986
      %1998 = vmatprep.subr.mxu0 0.0
      %1999 = vmatpush1.msra.mxu0 0.0
      %2000 = vmatprep.subr.mxu0 0.0
      %2001 = vmatpush1.msra.mxu0 0.0
      %2002 = vmatprep.subr.mxu0 0.0
      %2003 = vmatpush1.msra.mxu0 0.0
      %2004 = vmatprep.subr.mxu0 0.0
      %2005 = vmatpush1.msra.mxu0 0.0
      %2006 = vmatprep.subr.mxu0 0.0
      %2007 = vmatpush1.msra.mxu0 0.0
      %2008 = vmatprep.subr.mxu0 0.0
      %2009 = vmatpush1.msra.mxu0 0.0
      %2010 = vmatprep.subr.mxu0 0.0
      %2011 = vmatpush1.msra.mxu0 0.0
      %2012 = vmatprep.subr.mxu0 0.0
      %2013 = vmatpush1.msra.mxu0 0.0
      %2014 = vmatprep.subr.mxu0 0.0
      %2015 = vmatpush1.msra.mxu0 0.0
      %2016 = vmatprep.subr.mxu0 0.0
      %2017 = vmatpush1.msra.mxu0 0.0
      %2018 = vmatprep.subr.mxu0 0.0
      %2019 = vmatpush1.msra.mxu0 0.0
      %2020 = vmatprep.subr.mxu0 0.0
      %2021 = vmatpush1.msra.mxu0 0.0
      %2022 = vmatprep.subr.mxu0 0.0
      %2023 = vmatpush1.msra.mxu0 0.0
      %2024 = vmatprep.subr.mxu0 0.0
      %2025 = vmatpush1.msra.mxu0 0.0
      %2026 = vmatprep.subr.mxu0 0.0
      %2027 = vmatpush1.msra.mxu0 0.0
      %2028 = vmatprep.subr.mxu0 0.0
      %2029 = vmatpush1.msra.mxu0 0.0
      %2030 = vmatprep.subr.mxu0 0.0
      %2031 = vmatpush1.msra.mxu0 0.0
      %2032 = vmatprep.subr.mxu0 0.0
      %2033 = vmatpush1.msra.mxu0 0.0
      %2034 = vmatprep.subr.mxu0 0.0
      %2035 = vmatpush1.msra.mxu0 0.0
      %2036 = vmatprep.subr.mxu0 0.0
      %2037 = vmatpush1.msra.mxu0 0.0
      %2038 = vmatprep.subr.mxu0 0.0
      %2039 = vmatpush1.msra.mxu0 0.0
      %2040 = vmatprep.subr.mxu0 0.0
      %2041 = vmatpush1.msra.mxu0 0.0
      %2042 = vmatprep.subr.mxu0 0.0
      %2043 = vmatpush1.msra.mxu0 0.0
      %2044 = vmatprep.subr.mxu0 0.0
      %2045 = vmatpush1.msra.mxu0 0.0
      %2046 = vmatprep.subr.mxu0 0.0
      %2047 = vmatpush1.msra.mxu0 0.0
      %2048 = vmatprep.subr.mxu0 0.0
      %2049 = vmatpush1.msra.mxu0 0.0
      %2050 = vmatprep.subr.mxu0 0.0
      %2051 = vmatpush1.msra.mxu0 0.0
      %2052 = vmatprep.subr.mxu0 0.0
      %2053 = vmatpush1.msra.mxu0 0.0
      %2054 = vmatprep.subr.mxu0 0.0
      %2055 = vmatpush1.msra.mxu0 0.0
      %2056 = vmatprep.subr.mxu0 0.0
      %2057 = vmatpush1.msra.mxu0 0.0
      %2058 = vmatprep.subr.mxu0 0.0
      %2059 = vmatpush1.msra.mxu0 0.0
      %2060 = vmatprep.mubr.f32.mxu0 0.0
      %2061 = vmatmul.mubr.f32.gmra.mrb[0].mxu0 %v1991
      %v2062 = vpop.f32.mrb[0].mxu0
      %v2063 = vadd.f32 0.0, %v2062
      %v2064 = vpop.f32.mrb[0].mxu0
      %v2065 = vadd.f32 0.0, %v2064
      %2066 = vmatprep.mubr.f32.mxu0 0.0
      %2067 = vmatmul.mubr.f32.gmra.mrb[0].mxu0 %v1994
      %v2068 = vpop.f32.mrb[0].mxu0
      %v2069 = vadd.f32 0.0, %v2068
      %v2070 = vpop.f32.mrb[0].mxu0
      %v2071 = vadd.f32 0.0, %v2070
      %2072 = vdwg.mxu0
      %v2073 = vadd.f32 %v1972, %v2063
      %v2074 = vadd.f32 %v1973, %v2065
      %v2075 = vadd.f32 %v1974, %v2069
      %v2076 = vadd.f32 %v1975, %v2071
      %s2077 = scalar_lea.vmem %s1, 304
      %v2078 = vld [vmem:[%s2077] sm:$0xff]
      %v2079 = vld [vmem:[%s2077 + $0x8] sm:$0xff]
      %2080 = vrot.lane.b32.xlu0 %v171, 76
      %v2081 = vpop.permute.xlu0 %2080
      %2082 = vrot.lane.b32.xlu0 %v172, 76
      %v2083 = vpop.permute.xlu0 %2082
      %2084 = vrot.lane.b32.xlu0 %v173, 76
      %v2085 = vpop.permute.xlu0 %2084
      %vm2086 = vcmask 621568
      %v2087 = vsel %vm2086, %v2081, %v2083
      %v2088 = vsel %vm2086, %v2083, %v2085
      %v2092 = vsel %vm193, %v2078, 0
      %v2095 = vsel %vm193, %v2079, 0
      %2097 = vmatprep.subr.mxu0 %v2088
      %2098 = vmatpush1.msra.mxu0 %v2087
      %2099 = vmatprep.subr.mxu0 0.0
      %2100 = vmatpush1.msra.mxu0 0.0
      %2101 = vmatprep.subr.mxu0 0.0
      %2102 = vmatpush1.msra.mxu0 0.0
      %2103 = vmatprep.subr.mxu0 0.0
      %2104 = vmatpush1.msra.mxu0 0.0
      %2105 = vmatprep.subr.mxu0 0.0
      %2106 = vmatpush1.msra.mxu0 0.0
      %2107 = vmatprep.subr.mxu0 0.0
      %2108 = vmatpush1.msra.mxu0 0.0
      %2109 = vmatprep.subr.mxu0 0.0
      %2110 = vmatpush1.msra.mxu0 0.0
      %2111 = vmatprep.subr.mxu0 0.0
      %2112 = vmatpush1.msra.mxu0 0.0
      %2113 = vmatprep.subr.mxu0 0.0
      %2114 = vmatpush1.msra.mxu0 0.0
      %2115 = vmatprep.subr.mxu0 0.0
      %2116 = vmatpush1.msra.mxu0 0.0
      %2117 = vmatprep.subr.mxu0 0.0
      %2118 = vmatpush1.msra.mxu0 0.0
      %2119 = vmatprep.subr.mxu0 0.0
      %2120 = vmatpush1.msra.mxu0 0.0
      %2121 = vmatprep.subr.mxu0 0.0
      %2122 = vmatpush1.msra.mxu0 0.0
      %2123 = vmatprep.subr.mxu0 0.0
      %2124 = vmatpush1.msra.mxu0 0.0
      %2125 = vmatprep.subr.mxu0 0.0
      %2126 = vmatpush1.msra.mxu0 0.0
      %2127 = vmatprep.subr.mxu0 0.0
      %2128 = vmatpush1.msra.mxu0 0.0
      %2129 = vmatprep.subr.mxu0 0.0
      %2130 = vmatpush1.msra.mxu0 0.0
      %2131 = vmatprep.subr.mxu0 0.0
      %2132 = vmatpush1.msra.mxu0 0.0
      %2133 = vmatprep.subr.mxu0 0.0
      %2134 = vmatpush1.msra.mxu0 0.0
      %2135 = vmatprep.subr.mxu0 0.0
      %2136 = vmatpush1.msra.mxu0 0.0
      %2137 = vmatprep.subr.mxu0 0.0
      %2138 = vmatpush1.msra.mxu0 0.0
      %2139 = vmatprep.subr.mxu0 0.0
      %2140 = vmatpush1.msra.mxu0 0.0
      %2141 = vmatprep.subr.mxu0 0.0
      %2142 = vmatpush1.msra.mxu0 0.0
      %2143 = vmatprep.subr.mxu0 0.0
      %2144 = vmatpush1.msra.mxu0 0.0
      %2145 = vmatprep.subr.mxu0 0.0
      %2146 = vmatpush1.msra.mxu0 0.0
      %2147 = vmatprep.subr.mxu0 0.0
      %2148 = vmatpush1.msra.mxu0 0.0
      %2149 = vmatprep.subr.mxu0 0.0
      %2150 = vmatpush1.msra.mxu0 0.0
      %2151 = vmatprep.subr.mxu0 0.0
      %2152 = vmatpush1.msra.mxu0 0.0
      %2153 = vmatprep.subr.mxu0 0.0
      %2154 = vmatpush1.msra.mxu0 0.0
      %2155 = vmatprep.subr.mxu0 0.0
      %2156 = vmatpush1.msra.mxu0 0.0
      %2157 = vmatprep.subr.mxu0 0.0
      %2158 = vmatpush1.msra.mxu0 0.0
      %2159 = vmatprep.subr.mxu0 0.0
      %2160 = vmatpush1.msra.mxu0 0.0
      %2161 = vmatprep.mubr.f32.mxu0 0.0
      %2162 = vmatmul.mubr.f32.gmra.mrb[0].mxu0 %v2092
      %v2163 = vpop.f32.mrb[0].mxu0
      %v2164 = vadd.f32 0.0, %v2163
      %v2165 = vpop.f32.mrb[0].mxu0
      %v2166 = vadd.f32 0.0, %v2165
      %2167 = vmatprep.mubr.f32.mxu0 0.0
      %2168 = vmatmul.mubr.f32.gmra.mrb[0].mxu0 %v2095
      %v2169 = vpop.f32.mrb[0].mxu0
      %v2170 = vadd.f32 0.0, %v2169
      %v2171 = vpop.f32.mrb[0].mxu0
      %v2172 = vadd.f32 0.0, %v2171
      %2173 = vdwg.mxu0
      %v2174 = vadd.f32 %v2073, %v2164
      %v2175 = vadd.f32 %v2074, %v2166
      %v2176 = vadd.f32 %v2075, %v2170
      %v2177 = vadd.f32 %v2076, %v2172
      %s2178 = scalar_lea.vmem %s1, 320
      %v2179 = vld [vmem:[%s2178] sm:$0xff]
      %v2180 = vld [vmem:[%s2178 + $0x8] sm:$0xff]
      %2181 = vrot.lane.b32.xlu0 %v171, 64
      %v2182 = vpop.permute.xlu0 %2181
      %2183 = vrot.lane.b32.xlu0 %v172, 64
      %v2184 = vpop.permute.xlu0 %2183
      %2185 = vrot.lane.b32.xlu0 %v173, 64
      %v2186 = vpop.permute.xlu0 %2185
      %vm2187 = vcmask 523264
      %v2188 = vsel %vm2187, %v2182, %v2184
      %v2189 = vsel %vm2187, %v2184, %v2186
      %v2193 = vsel %vm193, %v2179, 0
      %v2196 = vsel %vm193, %v2180, 0
      %2198 = vmatprep.subr.mxu0 %v2189
      %2199 = vmatpush1.msra.mxu0 %v2188
      %2200 = vmatprep.subr.mxu0 0.0
      %2201 = vmatpush1.msra.mxu0 0.0
      %2202 = vmatprep.subr.mxu0 0.0
      %2203 = vmatpush1.msra.mxu0 0.0
      %2204 = vmatprep.subr.mxu0 0.0
      %2205 = vmatpush1.msra.mxu0 0.0
      %2206 = vmatprep.subr.mxu0 0.0
      %2207 = vmatpush1.msra.mxu0 0.0
      %2208 = vmatprep.subr.mxu0 0.0
      %2209 = vmatpush1.msra.mxu0 0.0
      %2210 = vmatprep.subr.mxu0 0.0
      %2211 = vmatpush1.msra.mxu0 0.0
      %2212 = vmatprep.subr.mxu0 0.0
      %2213 = vmatpush1.msra.mxu0 0.0
      %2214 = vmatprep.subr.mxu0 0.0
      %2215 = vmatpush1.msra.mxu0 0.0
      %2216 = vmatprep.subr.mxu0 0.0
      %2217 = vmatpush1.msra.mxu0 0.0
      %2218 = vmatprep.subr.mxu0 0.0
      %2219 = vmatpush1.msra.mxu0 0.0
      %2220 = vmatprep.subr.mxu0 0.0
      %2221 = vmatpush1.msra.mxu0 0.0
      %2222 = vmatprep.subr.mxu0 0.0
      %2223 = vmatpush1.msra.mxu0 0.0
      %2224 = vmatprep.subr.mxu0 0.0
      %2225 = vmatpush1.msra.mxu0 0.0
      %2226 = vmatprep.subr.mxu0 0.0
      %2227 = vmatpush1.msra.mxu0 0.0
      %2228 = vmatprep.subr.mxu0 0.0
      %2229 = vmatpush1.msra.mxu0 0.0
      %2230 = vmatprep.subr.mxu0 0.0
      %2231 = vmatpush1.msra.mxu0 0.0
      %2232 = vmatprep.subr.mxu0 0.0
      %2233 = vmatpush1.msra.mxu0 0.0
      %2234 = vmatprep.subr.mxu0 0.0
      %2235 = vmatpush1.msra.mxu0 0.0
      %2236 = vmatprep.subr.mxu0 0.0
      %2237 = vmatpush1.msra.mxu0 0.0
      %2238 = vmatprep.subr.mxu0 0.0
      %2239 = vmatpush1.msra.mxu0 0.0
      %2240 = vmatprep.subr.mxu0 0.0
      %2241 = vmatpush1.msra.mxu0 0.0
      %2242 = vmatprep.subr.mxu0 0.0
      %2243 = vmatpush1.msra.mxu0 0.0
      %2244 = vmatprep.subr.mxu0 0.0
      %2245 = vmatpush1.msra.mxu0 0.0
      %2246 = vmatprep.subr.mxu0 0.0
      %2247 = vmatpush1.msra.mxu0 0.0
      %2248 = vmatprep.subr.mxu0 0.0
      %2249 = vmatpush1.msra.mxu0 0.0
      %2250 = vmatprep.subr.mxu0 0.0
      %2251 = vmatpush1.msra.mxu0 0.0
      %2252 = vmatprep.subr.mxu0 0.0
      %2253 = vmatpush1.msra.mxu0 0.0
      %2254 = vmatprep.subr.mxu0 0.0
      %2255 = vmatpush1.msra.mxu0 0.0
      %2256 = vmatprep.subr.mxu0 0.0
      %2257 = vmatpush1.msra.mxu0 0.0
      %2258 = vmatprep.subr.mxu0 0.0
      %2259 = vmatpush1.msra.mxu0 0.0
      %2260 = vmatprep.subr.mxu0 0.0
      %2261 = vmatpush1.msra.mxu0 0.0
      %2262 = vmatprep.mubr.f32.mxu0 0.0
      %2263 = vmatmul.mubr.f32.gmra.mrb[0].mxu0 %v2193
      %v2264 = vpop.f32.mrb[0].mxu0
      %v2265 = vadd.f32 0.0, %v2264
      %v2266 = vpop.f32.mrb[0].mxu0
      %v2267 = vadd.f32 0.0, %v2266
      %2268 = vmatprep.mubr.f32.mxu0 0.0
      %2269 = vmatmul.mubr.f32.gmra.mrb[0].mxu0 %v2196
      %v2270 = vpop.f32.mrb[0].mxu0
      %v2271 = vadd.f32 0.0, %v2270
      %v2272 = vpop.f32.mrb[0].mxu0
      %v2273 = vadd.f32 0.0, %v2272
      %2274 = vdwg.mxu0
      %v2275 = vadd.f32 %v2174, %v2265
      %v2276 = vadd.f32 %v2175, %v2267
      %v2277 = vadd.f32 %v2176, %v2271
      %v2278 = vadd.f32 %v2177, %v2273
      %s2279 = scalar_lea.vmem %s1, 336
      %v2280 = vld [vmem:[%s2279] sm:$0xff]
      %v2281 = vld [vmem:[%s2279 + $0x8] sm:$0xff]
      %2282 = vrot.lane.b32.xlu0 %v171, 63
      %v2283 = vpop.permute.xlu0 %2282
      %2284 = vrot.lane.b32.xlu0 %v172, 63
      %v2285 = vpop.permute.xlu0 %2284
      %2286 = vrot.lane.b32.xlu0 %v173, 63
      %v2287 = vpop.permute.xlu0 %2286
      %vm2288 = vcmask 515072
      %v2289 = vsel %vm2288, %v2283, %v2285
      %v2290 = vsel %vm2288, %v2285, %v2287
      %v2294 = vsel %vm193, %v2280, 0
      %v2297 = vsel %vm193, %v2281, 0
      %2299 = vmatprep.subr.mxu0 %v2290
      %2300 = vmatpush1.msra.mxu0 %v2289
      %2301 = vmatprep.subr.mxu0 0.0
      %2302 = vmatpush1.msra.mxu0 0.0
      %2303 = vmatprep.subr.mxu0 0.0
      %2304 = vmatpush1.msra.mxu0 0.0
      %2305 = vmatprep.subr.mxu0 0.0
      %2306 = vmatpush1.msra.mxu0 0.0
      %2307 = vmatprep.subr.mxu0 0.0
      %2308 = vmatpush1.msra.mxu0 0.0
      %2309 = vmatprep.subr.mxu0 0.0
      %2310 = vmatpush1.msra.mxu0 0.0
      %2311 = vmatprep.subr.mxu0 0.0
      %2312 = vmatpush1.msra.mxu0 0.0
      %2313 = vmatprep.subr.mxu0 0.0
      %2314 = vmatpush1.msra.mxu0 0.0
      %2315 = vmatprep.subr.mxu0 0.0
      %2316 = vmatpush1.msra.mxu0 0.0
      %2317 = vmatprep.subr.mxu0 0.0
      %2318 = vmatpush1.msra.mxu0 0.0
      %2319 = vmatprep.subr.mxu0 0.0
      %2320 = vmatpush1.msra.mxu0 0.0
      %2321 = vmatprep.subr.mxu0 0.0
      %2322 = vmatpush1.msra.mxu0 0.0
      %2323 = vmatprep.subr.mxu0 0.0
      %2324 = vmatpush1.msra.mxu0 0.0
      %2325 = vmatprep.subr.mxu0 0.0
      %2326 = vmatpush1.msra.mxu0 0.0
      %2327 = vmatprep.subr.mxu0 0.0
      %2328 = vmatpush1.msra.mxu0 0.0
      %2329 = vmatprep.subr.mxu0 0.0
      %2330 = vmatpush1.msra.mxu0 0.0
      %2331 = vmatprep.subr.mxu0 0.0
      %2332 = vmatpush1.msra.mxu0 0.0
      %2333 = vmatprep.subr.mxu0 0.0
      %2334 = vmatpush1.msra.mxu0 0.0
      %2335 = vmatprep.subr.mxu0 0.0
      %2336 = vmatpush1.msra.mxu0 0.0
      %2337 = vmatprep.subr.mxu0 0.0
      %2338 = vmatpush1.msra.mxu0 0.0
      %2339 = vmatprep.subr.mxu0 0.0
      %2340 = vmatpush1.msra.mxu0 0.0
      %2341 = vmatprep.subr.mxu0 0.0
      %2342 = vmatpush1.msra.mxu0 0.0
      %2343 = vmatprep.subr.mxu0 0.0
      %2344 = vmatpush1.msra.mxu0 0.0
      %2345 = vmatprep.subr.mxu0 0.0
      %2346 = vmatpush1.msra.mxu0 0.0
      %2347 = vmatprep.subr.mxu0 0.0
      %2348 = vmatpush1.msra.mxu0 0.0
      %2349 = vmatprep.subr.mxu0 0.0
      %2350 = vmatpush1.msra.mxu0 0.0
      %2351 = vmatprep.subr.mxu0 0.0
      %2352 = vmatpush1.msra.mxu0 0.0
      %2353 = vmatprep.subr.mxu0 0.0
      %2354 = vmatpush1.msra.mxu0 0.0
      %2355 = vmatprep.subr.mxu0 0.0
      %2356 = vmatpush1.msra.mxu0 0.0
      %2357 = vmatprep.subr.mxu0 0.0
      %2358 = vmatpush1.msra.mxu0 0.0
      %2359 = vmatprep.subr.mxu0 0.0
      %2360 = vmatpush1.msra.mxu0 0.0
      %2361 = vmatprep.subr.mxu0 0.0
      %2362 = vmatpush1.msra.mxu0 0.0
      %2363 = vmatprep.mubr.f32.mxu0 0.0
      %2364 = vmatmul.mubr.f32.gmra.mrb[0].mxu0 %v2294
      %v2365 = vpop.f32.mrb[0].mxu0
      %v2366 = vadd.f32 0.0, %v2365
      %v2367 = vpop.f32.mrb[0].mxu0
      %v2368 = vadd.f32 0.0, %v2367
      %2369 = vmatprep.mubr.f32.mxu0 0.0
      %2370 = vmatmul.mubr.f32.gmra.mrb[0].mxu0 %v2297
      %v2371 = vpop.f32.mrb[0].mxu0
      %v2372 = vadd.f32 0.0, %v2371
      %v2373 = vpop.f32.mrb[0].mxu0
      %v2374 = vadd.f32 0.0, %v2373
      %2375 = vdwg.mxu0
      %v2376 = vadd.f32 %v2275, %v2366
      %v2377 = vadd.f32 %v2276, %v2368
      %v2378 = vadd.f32 %v2277, %v2372
      %v2379 = vadd.f32 %v2278, %v2374
      %s2380 = scalar_lea.vmem %s1, 352
      %v2381 = vld [vmem:[%s2380] sm:$0xff]
      %v2382 = vld [vmem:[%s2380 + $0x8] sm:$0xff]
      %2383 = vrot.lane.b32.xlu0 %v171, 62
      %v2384 = vpop.permute.xlu0 %2383
      %2385 = vrot.lane.b32.xlu0 %v172, 62
      %v2386 = vpop.permute.xlu0 %2385
      %2387 = vrot.lane.b32.xlu0 %v173, 62
      %v2388 = vpop.permute.xlu0 %2387
      %vm2389 = vcmask 506880
      %v2390 = vsel %vm2389, %v2384, %v2386
      %v2391 = vsel %vm2389, %v2386, %v2388
      %v2395 = vsel %vm193, %v2381, 0
      %v2398 = vsel %vm193, %v2382, 0
      %2400 = vmatprep.subr.mxu0 %v2391
      %2401 = vmatpush1.msra.mxu0 %v2390
      %2402 = vmatprep.subr.mxu0 0.0
      %2403 = vmatpush1.msra.mxu0 0.0
      %2404 = vmatprep.subr.mxu0 0.0
      %2405 = vmatpush1.msra.mxu0 0.0
      %2406 = vmatprep.subr.mxu0 0.0
      %2407 = vmatpush1.msra.mxu0 0.0
      %2408 = vmatprep.subr.mxu0 0.0
      %2409 = vmatpush1.msra.mxu0 0.0
      %2410 = vmatprep.subr.mxu0 0.0
      %2411 = vmatpush1.msra.mxu0 0.0
      %2412 = vmatprep.subr.mxu0 0.0
      %2413 = vmatpush1.msra.mxu0 0.0
      %2414 = vmatprep.subr.mxu0 0.0
      %2415 = vmatpush1.msra.mxu0 0.0
      %2416 = vmatprep.subr.mxu0 0.0
      %2417 = vmatpush1.msra.mxu0 0.0
      %2418 = vmatprep.subr.mxu0 0.0
      %2419 = vmatpush1.msra.mxu0 0.0
      %2420 = vmatprep.subr.mxu0 0.0
      %2421 = vmatpush1.msra.mxu0 0.0
      %2422 = vmatprep.subr.mxu0 0.0
      %2423 = vmatpush1.msra.mxu0 0.0
      %2424 = vmatprep.subr.mxu0 0.0
      %2425 = vmatpush1.msra.mxu0 0.0
      %2426 = vmatprep.subr.mxu0 0.0
      %2427 = vmatpush1.msra.mxu0 0.0
      %2428 = vmatprep.subr.mxu0 0.0
      %2429 = vmatpush1.msra.mxu0 0.0
      %2430 = vmatprep.subr.mxu0 0.0
      %2431 = vmatpush1.msra.mxu0 0.0
      %2432 = vmatprep.subr.mxu0 0.0
      %2433 = vmatpush1.msra.mxu0 0.0
      %2434 = vmatprep.subr.mxu0 0.0
      %2435 = vmatpush1.msra.mxu0 0.0
      %2436 = vmatprep.subr.mxu0 0.0
      %2437 = vmatpush1.msra.mxu0 0.0
      %2438 = vmatprep.subr.mxu0 0.0
      %2439 = vmatpush1.msra.mxu0 0.0
      %2440 = vmatprep.subr.mxu0 0.0
      %2441 = vmatpush1.msra.mxu0 0.0
      %2442 = vmatprep.subr.mxu0 0.0
      %2443 = vmatpush1.msra.mxu0 0.0
      %2444 = vmatprep.subr.mxu0 0.0
      %2445 = vmatpush1.msra.mxu0 0.0
      %2446 = vmatprep.subr.mxu0 0.0
      %2447 = vmatpush1.msra.mxu0 0.0
      %2448 = vmatprep.subr.mxu0 0.0
      %2449 = vmatpush1.msra.mxu0 0.0
      %2450 = vmatprep.subr.mxu0 0.0
      %2451 = vmatpush1.msra.mxu0 0.0
      %2452 = vmatprep.subr.mxu0 0.0
      %2453 = vmatpush1.msra.mxu0 0.0
      %2454 = vmatprep.subr.mxu0 0.0
      %2455 = vmatpush1.msra.mxu0 0.0
      %2456 = vmatprep.subr.mxu0 0.0
      %2457 = vmatpush1.msra.mxu0 0.0
      %2458 = vmatprep.subr.mxu0 0.0
      %2459 = vmatpush1.msra.mxu0 0.0
      %2460 = vmatprep.subr.mxu0 0.0
      %2461 = vmatpush1.msra.mxu0 0.0
      %2462 = vmatprep.subr.mxu0 0.0
      %2463 = vmatpush1.msra.mxu0 0.0
      %2464 = vmatprep.mubr.f32.mxu0 0.0
      %2465 = vmatmul.mubr.f32.gmra.mrb[0].mxu0 %v2395
      %v2466 = vpop.f32.mrb[0].mxu0
      %v2467 = vadd.f32 0.0, %v2466
      %v2468 = vpop.f32.mrb[0].mxu0
      %v2469 = vadd.f32 0.0, %v2468
      %2470 = vmatprep.mubr.f32.mxu0 0.0
      %2471 = vmatmul.mubr.f32.gmra.mrb[0].mxu0 %v2398
      %v2472 = vpop.f32.mrb[0].mxu0
      %v2473 = vadd.f32 0.0, %v2472
      %v2474 = vpop.f32.mrb[0].mxu0
      %v2475 = vadd.f32 0.0, %v2474
      %2476 = vdwg.mxu0
      %v2477 = vadd.f32 %v2376, %v2467
      %v2478 = vadd.f32 %v2377, %v2469
      %v2479 = vadd.f32 %v2378, %v2473
      %v2480 = vadd.f32 %v2379, %v2475
      %s2481 = scalar_lea.vmem %s1, 368
      %v2482 = vld [vmem:[%s2481] sm:$0xff]
      %v2483 = vld [vmem:[%s2481 + $0x8] sm:$0xff]
      %2484 = vrot.lane.b32.xlu0 %v171, 61
      %v2485 = vpop.permute.xlu0 %2484
      %2486 = vrot.lane.b32.xlu0 %v172, 61
      %v2487 = vpop.permute.xlu0 %2486
      %2488 = vrot.lane.b32.xlu0 %v173, 61
      %v2489 = vpop.permute.xlu0 %2488
      %vm2490 = vcmask 498688
      %v2491 = vsel %vm2490, %v2485, %v2487
      %v2492 = vsel %vm2490, %v2487, %v2489
      %v2496 = vsel %vm193, %v2482, 0
      %v2499 = vsel %vm193, %v2483, 0
      %2501 = vmatprep.subr.mxu0 %v2492
      %2502 = vmatpush1.msra.mxu0 %v2491
      %2503 = vmatprep.subr.mxu0 0.0
      %2504 = vmatpush1.msra.mxu0 0.0
      %2505 = vmatprep.subr.mxu0 0.0
      %2506 = vmatpush1.msra.mxu0 0.0
      %2507 = vmatprep.subr.mxu0 0.0
      %2508 = vmatpush1.msra.mxu0 0.0
      %2509 = vmatprep.subr.mxu0 0.0
      %2510 = vmatpush1.msra.mxu0 0.0
      %2511 = vmatprep.subr.mxu0 0.0
      %2512 = vmatpush1.msra.mxu0 0.0
      %2513 = vmatprep.subr.mxu0 0.0
      %2514 = vmatpush1.msra.mxu0 0.0
      %2515 = vmatprep.subr.mxu0 0.0
      %2516 = vmatpush1.msra.mxu0 0.0
      %2517 = vmatprep.subr.mxu0 0.0
      %2518 = vmatpush1.msra.mxu0 0.0
      %2519 = vmatprep.subr.mxu0 0.0
      %2520 = vmatpush1.msra.mxu0 0.0
      %2521 = vmatprep.subr.mxu0 0.0
      %2522 = vmatpush1.msra.mxu0 0.0
      %2523 = vmatprep.subr.mxu0 0.0
      %2524 = vmatpush1.msra.mxu0 0.0
      %2525 = vmatprep.subr.mxu0 0.0
      %2526 = vmatpush1.msra.mxu0 0.0
      %2527 = vmatprep.subr.mxu0 0.0
      %2528 = vmatpush1.msra.mxu0 0.0
      %2529 = vmatprep.subr.mxu0 0.0
      %2530 = vmatpush1.msra.mxu0 0.0
      %2531 = vmatprep.subr.mxu0 0.0
      %2532 = vmatpush1.msra.mxu0 0.0
      %2533 = vmatprep.subr.mxu0 0.0
      %2534 = vmatpush1.msra.mxu0 0.0
      %2535 = vmatprep.subr.mxu0 0.0
      %2536 = vmatpush1.msra.mxu0 0.0
      %2537 = vmatprep.subr.mxu0 0.0
      %2538 = vmatpush1.msra.mxu0 0.0
      %2539 = vmatprep.subr.mxu0 0.0
      %2540 = vmatpush1.msra.mxu0 0.0
      %2541 = vmatprep.subr.mxu0 0.0
      %2542 = vmatpush1.msra.mxu0 0.0
      %2543 = vmatprep.subr.mxu0 0.0
      %2544 = vmatpush1.msra.mxu0 0.0
      %2545 = vmatprep.subr.mxu0 0.0
      %2546 = vmatpush1.msra.mxu0 0.0
      %2547 = vmatprep.subr.mxu0 0.0
      %2548 = vmatpush1.msra.mxu0 0.0
      %2549 = vmatprep.subr.mxu0 0.0
      %2550 = vmatpush1.msra.mxu0 0.0
      %2551 = vmatprep.subr.mxu0 0.0
      %2552 = vmatpush1.msra.mxu0 0.0
      %2553 = vmatprep.subr.mxu0 0.0
      %2554 = vmatpush1.msra.mxu0 0.0
      %2555 = vmatprep.subr.mxu0 0.0
      %2556 = vmatpush1.msra.mxu0 0.0
      %2557 = vmatprep.subr.mxu0 0.0
      %2558 = vmatpush1.msra.mxu0 0.0
      %2559 = vmatprep.subr.mxu0 0.0
      %2560 = vmatpush1.msra.mxu0 0.0
      %2561 = vmatprep.subr.mxu0 0.0
      %2562 = vmatpush1.msra.mxu0 0.0
      %2563 = vmatprep.subr.mxu0 0.0
      %2564 = vmatpush1.msra.mxu0 0.0
      %2565 = vmatprep.mubr.f32.mxu0 0.0
      %2566 = vmatmul.mubr.f32.gmra.mrb[0].mxu0 %v2496
      %v2567 = vpop.f32.mrb[0].mxu0
      %v2568 = vadd.f32 0.0, %v2567
      %v2569 = vpop.f32.mrb[0].mxu0
      %v2570 = vadd.f32 0.0, %v2569
      %2571 = vmatprep.mubr.f32.mxu0 0.0
      %2572 = vmatmul.mubr.f32.gmra.mrb[0].mxu0 %v2499
      %v2573 = vpop.f32.mrb[0].mxu0
      %v2574 = vadd.f32 0.0, %v2573
      %v2575 = vpop.f32.mrb[0].mxu0
      %v2576 = vadd.f32 0.0, %v2575
      %2577 = vdwg.mxu0
      %v2578 = vadd.f32 %v2477, %v2568
      %v2579 = vadd.f32 %v2478, %v2570
      %v2580 = vadd.f32 %v2479, %v2574
      %v2581 = vadd.f32 %v2480, %v2576
      %s2582 = scalar_lea.vmem %s1, 384
      %v2583 = vld [vmem:[%s2582] sm:$0xff]
      %v2584 = vld [vmem:[%s2582 + $0x8] sm:$0xff]
      %2585 = vrot.lane.b32.xlu0 %v171, 60
      %v2586 = vpop.permute.xlu0 %2585
      %2587 = vrot.lane.b32.xlu0 %v172, 60
      %v2588 = vpop.permute.xlu0 %2587
      %2589 = vrot.lane.b32.xlu0 %v173, 60
      %v2590 = vpop.permute.xlu0 %2589
      %vm2591 = vcmask 490496
      %v2592 = vsel %vm2591, %v2586, %v2588
      %v2593 = vsel %vm2591, %v2588, %v2590
      %v2597 = vsel %vm193, %v2583, 0
      %v2600 = vsel %vm193, %v2584, 0
      %2602 = vmatprep.subr.mxu0 %v2593
      %2603 = vmatpush1.msra.mxu0 %v2592
      %2604 = vmatprep.subr.mxu0 0.0
      %2605 = vmatpush1.msra.mxu0 0.0
      %2606 = vmatprep.subr.mxu0 0.0
      %2607 = vmatpush1.msra.mxu0 0.0
      %2608 = vmatprep.subr.mxu0 0.0
      %2609 = vmatpush1.msra.mxu0 0.0
      %2610 = vmatprep.subr.mxu0 0.0
      %2611 = vmatpush1.msra.mxu0 0.0
      %2612 = vmatprep.subr.mxu0 0.0
      %2613 = vmatpush1.msra.mxu0 0.0
      %2614 = vmatprep.subr.mxu0 0.0
      %2615 = vmatpush1.msra.mxu0 0.0
      %2616 = vmatprep.subr.mxu0 0.0
      %2617 = vmatpush1.msra.mxu0 0.0
      %2618 = vmatprep.subr.mxu0 0.0
      %2619 = vmatpush1.msra.mxu0 0.0
      %2620 = vmatprep.subr.mxu0 0.0
      %2621 = vmatpush1.msra.mxu0 0.0
      %2622 = vmatprep.subr.mxu0 0.0
      %2623 = vmatpush1.msra.mxu0 0.0
      %2624 = vmatprep.subr.mxu0 0.0
      %2625 = vmatpush1.msra.mxu0 0.0
      %2626 = vmatprep.subr.mxu0 0.0
      %2627 = vmatpush1.msra.mxu0 0.0
      %2628 = vmatprep.subr.mxu0 0.0
      %2629 = vmatpush1.msra.mxu0 0.0
      %2630 = vmatprep.subr.mxu0 0.0
      %2631 = vmatpush1.msra.mxu0 0.0
      %2632 = vmatprep.subr.mxu0 0.0
      %2633 = vmatpush1.msra.mxu0 0.0
      %2634 = vmatprep.subr.mxu0 0.0
      %2635 = vmatpush1.msra.mxu0 0.0
      %2636 = vmatprep.subr.mxu0 0.0
      %2637 = vmatpush1.msra.mxu0 0.0
      %2638 = vmatprep.subr.mxu0 0.0
      %2639 = vmatpush1.msra.mxu0 0.0
      %2640 = vmatprep.subr.mxu0 0.0
      %2641 = vmatpush1.msra.mxu0 0.0
      %2642 = vmatprep.subr.mxu0 0.0
      %2643 = vmatpush1.msra.mxu0 0.0
      %2644 = vmatprep.subr.mxu0 0.0
      %2645 = vmatpush1.msra.mxu0 0.0
      %2646 = vmatprep.subr.mxu0 0.0
      %2647 = vmatpush1.msra.mxu0 0.0
      %2648 = vmatprep.subr.mxu0 0.0
      %2649 = vmatpush1.msra.mxu0 0.0
      %2650 = vmatprep.subr.mxu0 0.0
      %2651 = vmatpush1.msra.mxu0 0.0
      %2652 = vmatprep.subr.mxu0 0.0
      %2653 = vmatpush1.msra.mxu0 0.0
      %2654 = vmatprep.subr.mxu0 0.0
      %2655 = vmatpush1.msra.mxu0 0.0
      %2656 = vmatprep.subr.mxu0 0.0
      %2657 = vmatpush1.msra.mxu0 0.0
      %2658 = vmatprep.subr.mxu0 0.0
      %2659 = vmatpush1.msra.mxu0 0.0
      %2660 = vmatprep.subr.mxu0 0.0
      %2661 = vmatpush1.msra.mxu0 0.0
      %2662 = vmatprep.subr.mxu0 0.0
      %2663 = vmatpush1.msra.mxu0 0.0
      %2664 = vmatprep.subr.mxu0 0.0
      %2665 = vmatpush1.msra.mxu0 0.0
      %2666 = vmatprep.mubr.f32.mxu0 0.0
      %2667 = vmatmul.mubr.f32.gmra.mrb[0].mxu0 %v2597
      %v2668 = vpop.f32.mrb[0].mxu0
      %v2669 = vadd.f32 0.0, %v2668
      %v2670 = vpop.f32.mrb[0].mxu0
      %v2671 = vadd.f32 0.0, %v2670
      %2672 = vmatprep.mubr.f32.mxu0 0.0
      %2673 = vmatmul.mubr.f32.gmra.mrb[0].mxu0 %v2600
      %v2674 = vpop.f32.mrb[0].mxu0
      %v2675 = vadd.f32 0.0, %v2674
      %v2676 = vpop.f32.mrb[0].mxu0
      %v2677 = vadd.f32 0.0, %v2676
      %2678 = vdwg.mxu0
      %v2679 = vadd.f32 %v2578, %v2669
      %v2680 = vadd.f32 %v2579, %v2671
      %v2681 = vadd.f32 %v2580, %v2675
      %v2682 = vadd.f32 %v2581, %v2677
      %v2683 = vld [vmem:[%s2] sm:$0xff]
      %v2684 = vld [vmem:[%s2 + $0x8] sm:$0xff]
      %2686 = vset.pattern.permute.xlu0 0
      %2687 = vperm.xlu0 %2686, %v2683
      %v2688 = vpop.permute.xlu0 %2687
      %2691 = vset.pattern.permute.xlu0 0
      %2692 = vperm.xlu0 %2691, %v2684
      %v2693 = vpop.permute.xlu0 %2692
      %v2695 = vadd.f32 %v2679, %v2688
      %v2696 = vadd.f32 %v2680, %v2688
      %v2697 = vadd.f32 %v2681, %v2693
      %v2698 = vadd.f32 %v2682, %v2693
      %2699 = vst [vmem:[%s170] sm:$0xff] %v2695
      %2700 = vst [vmem:[%s170 + $0x8] sm:$0xff] %v2696
      %2701 = vst [vmem:[%s170 + $0x10] sm:$0xff] %v2697
      %2702 = vst [vmem:[%s170 + $0x18] sm:$0xff] %v2698
      %p2703 = scmp.lt.s32.totalorder %s14, 1
      %s2704 = scalar_select %p2703, %s14, 1
      %s2705 = smul.addr %s2704, 4
      %s2706 = smul.addr %s2705, 8
      %s2707 = scalar_lea.vmem %s3, %s2706
      // Predicated region
      $region33: #{c3_forward.1} parent=31 // pred_check
        %p2708 = pneg %p100
      $region34: #{c3_forward.1} parent=31 // pred_check_branch
        %2710 = sbr.rel (%p2708) target = $region36
      $region35: #{c3_forward.1} parent=31 // pred_region
        _
      $region36: #{c3_forward.1} parent=31 // pred_fallthru
        _
    $region32: #{c3_forward.1} parent=5 // pred_fallthru
      _
    %p2711 = scmp.le.s32.totalorder 2, %s9
    // Predicated region
    $region37: #{c3_forward.1} parent=5 // pred_check
      %p2712 = pneg %p2711
    $region38: #{c3_forward.1} parent=5 // pred_check_branch
      %2714 = sbr.rel (%p2712) target = $region40
    $region39: #{c3_forward.1} parent=5 // pred_region
      %s2715 = ssub.s32 %s9, 2
      // Predicated region
      $region41: #{c3_forward.1} parent=39 // pred_check
        %p2716 = pneg %p106
      $region42: #{c3_forward.1} parent=39 // pred_check_branch
        %2718 = sbr.rel (%p2716) target = $region44
      $region43: #{c3_forward.1} parent=39 // pred_region
        %p2719 = scmp.lt.s32.totalorder %s15, 1
        %s2720 = scalar_select %p2719, %s15, 1
        %s2721 = smul.addr %s2720, 4
        %s2722 = smul.addr %s2721, 8
        %s2723 = scalar_lea.vmem %s3, %s2722
      $region44: #{c3_forward.1} parent=39 // pred_fallthru
        _
    $region40: #{c3_forward.1} parent=5 // pred_fallthru
      _
  $region6: #{c3_forward.1} parent=0 // loop_footer
    %s13 = sadd.s32 1, %s9
  $region7: #{c3_forward.1} parent=0 // loop_footer_branch
    %8 = sbr.rel target = $region3
  $region8: #{c3_forward.1} parent=0 // loop_exit
    _

</llo_original>
